<compile_context>
chip_gen: v7x
topology: tpu7x:2x2x1
jax: 0.10.0
libtpu: 0.0.40
codegen_flags: <defaults>
</compile_context>

<pallas_src>
import functools
import math

import jax
import jax.numpy as jnp
from jax.experimental import pallas as pl
from jax.experimental.pallas import tpu as pltpu


# ---------------------------------------------------------------------------
# Fused Actor kernel: LSTM recurrence + all four heads in one invocation.
# ---------------------------------------------------------------------------
def actor_fused_kernel(num_points, num_channels,          # static Python ints
                       pmax_ref,                          # SMEM (1,)
                       x_ref,                             # (T*B, S), row = t*B + b
                       wih_ref, whh_ref, b_ref,           # (S,4H) (H,4H) (1,4H)
                       h0_ref, c0_ref,                    # (B, H)
                       hw1_ref, hb1_ref,                  # (H,256) (1,256)
                       hw2_ref, hb2_ref,                  # (256,OUT_PAD) (1,OUT_PAD)
                       out_ref, h_out_ref, c_out_ref,     # (B,OUT_PAD) (B,H) (B,H)
                       gx_sc):                            # VMEM scratch (T*B, 4H)
    B, H = h0_ref.shape
    TB, _ = x_ref.shape
    T = TB // B

    # --- hoisted input projection: one matmul over all timesteps ------------
    # gx_sc[t*B + b, :] = x[b, t, :] @ Wih + (b_ih + b_hh)   (time-major rows)
    gx_sc[...] = (jnp.dot(x_ref[...], wih_ref[...],
                          preferred_element_type=jnp.float32) + b_ref[...])

    whh = whh_ref[...]   # hoisted: loaded into vregs once for the whole loop

    def lstm_step(start, h, c):
        # Contiguous, sublane-aligned (B, 4H) load (B is a multiple of 8).
        gx_t = gx_sc[pl.ds(start, B), :]
        gates = gx_t + jnp.dot(h, whh, preferred_element_type=jnp.float32)
        if H % 128 == 0:
            # Gate boundaries are vreg-aligned: activate only what is needed
            # (4 EUP passes/step instead of 8).
            i_g = jax.nn.sigmoid(gates[:, 0 * H:1 * H])
            f_g = jax.nn.sigmoid(gates[:, 1 * H:2 * H])
            g_g = jnp.tanh(gates[:, 2 * H:3 * H])
            o_g = jax.nn.sigmoid(gates[:, 3 * H:4 * H])
        else:
            # Small H: gate boundaries are not lane-aligned; full-width EUP
            # passes then static lane slices are cheaper than ragged slices.
            sig = jax.nn.sigmoid(gates)
            tnh = jnp.tanh(gates)
            i_g = sig[:, 0 * H:1 * H]
            f_g = sig[:, 1 * H:2 * H]
            g_g = tnh[:, 2 * H:3 * H]
            o_g = sig[:, 3 * H:4 * H]
        c_new = f_g * c + i_g * g_g
        h_new = o_g * jnp.tanh(c_new)
        return h_new, c_new

    h = h0_ref[...]
    c = c0_ref[...]

    if T <= 16:
        # Short sequence: static unroll (start offsets are compile-time ints).
        for t in range(T):
            h, c = lstm_step(t * B, h, c)
    else:
        # Long sequence: bounded live ranges / code size via fori_loop.
        def body(t, carry):
            hh, cc = carry
            return lstm_step(pl.multiple_of(t * B, B), hh, cc)
        h, c = jax.lax.fori_loop(0, T, body, (h, c), unroll=2)

    h_out_ref[...] = h
    c_out_ref[...] = c

    # --- fused heads: two matmuls instead of eight ---------------------------
    z = jnp.maximum(
        jnp.dot(h, hw1_ref[...], preferred_element_type=jnp.float32)
        + hb1_ref[...], 0.0)                                   # (B, 256)
    logits = (jnp.dot(z, hw2_ref[...], preferred_element_type=jnp.float32)
              + hb2_ref[...])                                  # (B, OUT_PAD)

    NP, NC = num_points, num_channels
    pmax = pmax_ref[0]

    # Lane-mask construction of the (B, OUT_PAD) output slab: all ops are
    # full-width, finished by a single unmasked store (no vst.msk partials).
    lane = jax.lax.broadcasted_iota(jnp.int32, logits.shape, 1)
    pts_m = lane < NP
    chn_m = jnp.logical_and(lane >= NP, lane < NP + NC)
    mu_m = lane == NP + NC
    sg_m = lane == NP + NC + 1

    neg = jnp.float32(-1e30)

    def masked_softmax(mask):
        ml = jnp.where(mask, logits, neg)
        m = jnp.max(ml, axis=-1, keepdims=True)
        e = jnp.where(mask, jnp.exp(ml - m), 0.0)
        # EUP approximate reciprocal for the denominator (off the VALU slot).
        return e * pl.reciprocal(jnp.sum(e, axis=-1, keepdims=True), approx=True)

    pts = masked_softmax(pts_m)
    chn = masked_softmax(chn_m)
    mu = jax.nn.sigmoid(logits) * (pmax - 1e-10) + 1e-10
    sg = jax.nn.softplus(logits)

    out_ref[...] = jnp.where(pts_m, pts,
                   jnp.where(chn_m, chn,
                   jnp.where(mu_m, mu,
                   jnp.where(sg_m, sg, 0.0))))


def run_actor_fused(xt, params, h0, c0, pmax_arr, num_points, num_channels):
    """xt: (T*Bp, S) time-major, row = t*Bp + b. Returns (slab, h_last, c_last)."""
    Bp, H = h0.shape
    TBp, S = xt.shape
    out_pad = params["head_w2"].shape[1]
    four_h = params["whh"].shape[1]

    kernel = functools.partial(actor_fused_kernel, num_points, num_channels)

    # Explicit VMEM budget (review: v5e's default scoped limit is 16 MiB and
    # gx_sc scales with B*T*4H; at demo sizes this is tiny but we size it
    # from the real footprint so scale-up does not hit a silent cliff).
    f32 = 4
    operand_bytes = (TBp * S + S * four_h + H * four_h + four_h
                     + 2 * Bp * H + H * 256 + 256 + 256 * out_pad + out_pad) * f32
    out_bytes = (Bp * out_pad + 2 * Bp * H) * f32
    scratch_bytes = TBp * four_h * f32
    vmem_limit = int(min(128 * 1024 * 1024,
                         max(2 * (operand_bytes + out_bytes + scratch_bytes)
                             + (2 << 20), 32 * 1024 * 1024)))

    # NOTE for scale-up (large B / H, v7x): add a batch grid axis with
    # dimension_semantics=("parallel",) to use both TensorCores and tile the
    # hoisted projection (bounding gx_sc); unnecessary at demo sizes.
    return pl.pallas_call(
        kernel,
        out_shape=(jax.ShapeDtypeStruct((Bp, out_pad), jnp.float32),
                   jax.ShapeDtypeStruct((Bp, H), jnp.float32),
                   jax.ShapeDtypeStruct((Bp, H), jnp.float32)),
        in_specs=(
            [pl.BlockSpec(memory_space=pltpu.MemorySpace.SMEM)]       # pmax
            + [pl.BlockSpec(memory_space=pltpu.MemorySpace.VMEM)] * 10),
        scratch_shapes=[pltpu.VMEM((TBp, four_h), jnp.float32)],
        compiler_params=pltpu.CompilerParams(vmem_limit_bytes=vmem_limit),
    )(pmax_arr, xt, params["wih"], params["whh"], params["b"], h0, c0,
      params["head_w1"], params["head_b1"], params["head_w2"], params["head_b2"])


# ---------------------------------------------------------------------------
# Parameter init + full forward
# ---------------------------------------------------------------------------
def init_actor_params(key, num_states, num_points, num_channels,
                      lstm_hidden=128):
    H = lstm_hidden
    ks = jax.random.split(key, 20)

    def rnd(k, shape, scale=0.1):
        return (scale * jax.random.normal(k, shape)).astype(jnp.float32)

    # LSTM weights stored transposed vs. PyTorch: (in, 4H) / (H, 4H),
    # gate order i,f,g,o; b = bias_ih + bias_hh combined.
    params = {
        "wih": rnd(ks[0], (num_states, 4 * H)),
        "whh": rnd(ks[1], (H, 4 * H)),
        "b": rnd(ks[2], (1, 4 * H)),
    }

    outs = [("point", num_points), ("channel", num_channels),
            ("mu", 1), ("sigma", 1)]
    raw_heads = {}
    i = 3
    for name, od in outs:
        w1 = rnd(ks[i], (H, 64));      b1 = rnd(ks[i + 1], (1, 64))
        w2 = rnd(ks[i + 2], (64, od)); b2 = rnd(ks[i + 3], (1, od))
        raw_heads[name] = (w1, b1, w2, b2)
        i += 4
    params["raw_heads"] = raw_heads

    # --- fused head weights: one (H,256) first layer, block-diag 2nd layer --
    head_w1 = jnp.concatenate([raw_heads[n][0] for n, _ in outs], axis=1)  # (H,256)
    head_b1 = jnp.concatenate([raw_heads[n][1] for n, _ in outs], axis=1)  # (1,256)

    d_out = num_points + num_channels + 2
    out_pad = max(128, ((d_out + 127) // 128) * 128)   # lane-dense output width
    head_w2 = jnp.zeros((4 * 64, out_pad), jnp.float32)
    head_b2 = jnp.zeros((1, out_pad), jnp.float32)
    col = 0
    for j, (name, od) in enumerate(outs):
        w2, b2 = raw_heads[name][2], raw_heads[name][3]
        head_w2 = head_w2.at[j * 64:(j + 1) * 64, col:col + od].set(w2)
        head_b2 = head_b2.at[:, col:col + od].set(b2)
        col += od

    params["head_w1"] = head_w1
    params["head_b1"] = head_b1
    params["head_w2"] = head_w2
    params["head_b2"] = head_b2
    return params


def actor_forward(params, x, pmax, num_points, num_channels, hidden=None):
    """x: (B, T, num_states) float32 (PyTorch batch-first convention)."""
    B, T, S = x.shape
    H = params["whh"].shape[0]

    # Pad batch to a multiple of 8 (vreg sublanes); dummy rows sliced off.
    Bp = max(8, ((B + 7) // 8) * 8)

    if hidden is None:
        h0 = jnp.zeros((Bp, H), jnp.float32)
        c0 = jnp.zeros((Bp, H), jnp.float32)
    else:
        h0 = jnp.zeros((Bp, H), jnp.float32).at[:B].set(
            hidden[0].reshape(B, H).astype(jnp.float32))
        c0 = jnp.zeros((Bp, H), jnp.float32).at[:B].set(
            hidden[1].reshape(B, H).astype(jnp.float32))

    xp = jnp.zeros((Bp, T, S), jnp.float32).at[:B].set(x.astype(jnp.float32))
    # Time-major layout (tiny one-time transpose in the wrapper) so the
    # per-step gate fetch inside the kernel is contiguous: row = t*Bp + b.
    xt = xp.transpose(1, 0, 2).reshape(T * Bp, S)

    pmax_arr = jnp.asarray([pmax], dtype=jnp.float32)

    slab, h_last, c_last = run_actor_fused(
        xt, params, h0, c0, pmax_arr, num_points, num_channels)

    slab = slab[:B]
    h_last = h_last[:B]
    c_last = c_last[:B]

    np_, nc_ = num_points, num_channels
    prob_points = slab[:, :np_]
    prob_channels = slab[:, np_:np_ + nc_]
    power_mu = slab[:, np_ + nc_:np_ + nc_ + 1]
    power_sigma = slab[:, np_ + nc_ + 1:np_ + nc_ + 2]

    new_hidden = (h_last.reshape(1, B, H), c_last.reshape(1, B, H))
    return prob_points, prob_channels, (power_mu, power_sigma), new_hidden


# ---------------------------------------------------------------------------
# Pure-JAX reference (mirrors the PyTorch module) for correctness checking.
# Matmuls use HIGHEST precision so the reference is exact f32.
# ---------------------------------------------------------------------------
def actor_reference(params, x, pmax):
    B, T, S = x.shape
    H = params["whh"].shape[0]
    hi = jax.lax.Precision.HIGHEST
    h = jnp.zeros((B, H), jnp.float32)
    c = jnp.zeros((B, H), jnp.float32)
    for t in range(T):
        g = (jnp.dot(x[:, t, :], params["wih"], precision=hi)
             + jnp.dot(h, params["whh"], precision=hi) + params["b"])
        i = jax.nn.sigmoid(g[:, 0 * H:1 * H])
        f = jax.nn.sigmoid(g[:, 1 * H:2 * H])
        gg = jnp.tanh(g[:, 2 * H:3 * H])
        o = jax.nn.sigmoid(g[:, 3 * H:4 * H])
        c = f * c + i * gg
        h = o * jnp.tanh(c)

    def head(w1, b1, w2, b2):
        z = jnp.maximum(jnp.dot(h, w1, precision=hi) + b1, 0.0)
        return jnp.dot(z, w2, precision=hi) + b2

    raw = params["raw_heads"]
    pts = jax.nn.softmax(head(*raw["point"]), axis=-1)
    chn = jax.nn.softmax(head(*raw["channel"]), axis=-1)
    mu = jax.nn.sigmoid(head(*raw["mu"])) * (pmax - 1e-10) + 1e-10
    sg = jax.nn.softplus(head(*raw["sigma"]))
    return pts, chn, mu, sg, h, c


if __name__ == "__main__":
    # Small shapes consistent with the module.
    B, T = 2, 8
    num_states, num_points, num_channels = 16, 8, 4
    lstm_hidden = 32
    pmax = 2.0

    key = jax.random.PRNGKey(0)
    pkey, xkey = jax.random.split(key)
    params = init_actor_params(pkey, num_states, num_points, num_channels,
                               lstm_hidden)
    x = jax.random.normal(xkey, (B, T, num_states), dtype=jnp.float32)

    prob_points, prob_channels, (power_mu, power_sigma), new_hidden = \
        actor_forward(params, x, pmax, num_points, num_channels)

    jax.block_until_ready(
        (prob_points, prob_channels, power_mu, power_sigma, new_hidden))

    # Shape checks
    assert prob_points.shape == (B, num_points)
    assert prob_channels.shape == (B, num_channels)
    assert power_mu.shape == (B, 1) and power_sigma.shape == (B, 1)
    assert new_hidden[0].shape == (1, B, lstm_hidden)
    assert new_hidden[1].shape == (1, B, lstm_hidden)

    # Numerical check against a pure-JAX reference of the PyTorch module.
    # Tightened from the previous 2e-2: LSTM state / mu / sigma at 1e-4
    # (all-f32 path); softmax heads at 5e-3 because their denominator goes
    # through the approximate EUP reciprocal (pl.reciprocal(approx=True)).
    r_pts, r_chn, r_mu, r_sg, r_h, r_c = actor_reference(params, x, pmax)
    tol = dict(atol=1e-4, rtol=1e-4)
    soft_tol = dict(atol=5e-3, rtol=5e-3)
    assert jnp.allclose(prob_points, r_pts, **soft_tol)
    assert jnp.allclose(prob_channels, r_chn, **soft_tol)
    assert jnp.allclose(power_mu, r_mu, **tol)
    assert jnp.allclose(power_sigma, r_sg, **tol)
    assert jnp.allclose(new_hidden[0][0], r_h, **tol)
    assert jnp.allclose(new_hidden[1][0], r_c, **tol)
    assert jnp.allclose(jnp.sum(prob_points, -1), 1.0, atol=5e-3)
    assert jnp.allclose(jnp.sum(prob_channels, -1), 1.0, atol=5e-3)

    print("KERNEL_OK")
</pallas_src>

<mosaic_0001>
module attributes {stable_mosaic.version = 11 : i64} {
  func.func @actor_fused_kernel(%arg0: memref<1xf32, #tpu.memory_space<smem>>, %arg1: memref<64x16xf32, #tpu.memory_space<vmem>>, %arg2: memref<16x128xf32, #tpu.memory_space<vmem>>, %arg3: memref<32x128xf32, #tpu.memory_space<vmem>>, %arg4: memref<1x128xf32, #tpu.memory_space<vmem>>, %arg5: memref<8x32xf32, #tpu.memory_space<vmem>>, %arg6: memref<8x32xf32, #tpu.memory_space<vmem>>, %arg7: memref<32x256xf32, #tpu.memory_space<vmem>>, %arg8: memref<1x256xf32, #tpu.memory_space<vmem>>, %arg9: memref<256x128xf32, #tpu.memory_space<vmem>>, %arg10: memref<1x128xf32, #tpu.memory_space<vmem>>, %arg11: memref<8x128xf32, #tpu.memory_space<vmem>>, %arg12: memref<8x32xf32, #tpu.memory_space<vmem>>, %arg13: memref<8x32xf32, #tpu.memory_space<vmem>>, %arg14: memref<64x128xf32, #tpu.memory_space<vmem>>) attributes {dimension_semantics = [], scalar_prefetch = 0 : i64, scratch_operands = 1 : i64, tpu.core_type = #tpu.core_type<tc>} {
    %c0 = arith.constant 0 : index
    %c0_0 = arith.constant 0 : index
    %0 = vector.load %arg1[%c0, %c0_0] : memref<64x16xf32, #tpu.memory_space<vmem>>, vector<64x16xf32>
    %c0_1 = arith.constant 0 : index
    %c0_2 = arith.constant 0 : index
    %1 = vector.load %arg2[%c0_1, %c0_2] : memref<16x128xf32, #tpu.memory_space<vmem>>, vector<16x128xf32>
    %cst = arith.constant dense<0.000000e+00> : vector<64x128xf32>
    %2 = tpu.matmul %0, %1, %cst {dimension_numbers = #tpu.dot_dimension_numbers<[1], [0], [0], [1], [0, 0, 1, 1], [], []>} : vector<64x16xf32>, vector<16x128xf32>, vector<64x128xf32> -> vector<64x128xf32>
    %c0_3 = arith.constant 0 : index
    %c0_4 = arith.constant 0 : index
    %3 = vector.load %arg4[%c0_3, %c0_4] : memref<1x128xf32, #tpu.memory_space<vmem>>, vector<1x128xf32>
    %4 = vector.broadcast %3 : vector<1x128xf32> to vector<64x128xf32>
    %5 = arith.addf %2, %4 : vector<64x128xf32>
    %c0_5 = arith.constant 0 : index
    %c0_6 = arith.constant 0 : index
    %6 = vector.load %arg14[%c0_5, %c0_6] : memref<64x128xf32, #tpu.memory_space<vmem>>, vector<64x128xf32>
    tpu.vector_store %arg14[%c0_5, %c0_6], %5 {strides = array<i32>} : memref<64x128xf32, #tpu.memory_space<vmem>>, vector<64x128xf32>,
    %c0_7 = arith.constant 0 : index
    %c0_8 = arith.constant 0 : index
    %7 = vector.load %arg3[%c0_7, %c0_8] : memref<32x128xf32, #tpu.memory_space<vmem>>, vector<32x128xf32>
    %c0_9 = arith.constant 0 : index
    %c0_10 = arith.constant 0 : index
    %8 = vector.load %arg5[%c0_9, %c0_10] : memref<8x32xf32, #tpu.memory_space<vmem>>, vector<8x32xf32>
    %c0_11 = arith.constant 0 : index
    %c0_12 = arith.constant 0 : index
    %9 = vector.load %arg6[%c0_11, %c0_12] : memref<8x32xf32, #tpu.memory_space<vmem>>, vector<8x32xf32>
    %c0_13 = arith.constant 0 : index
    %c0_14 = arith.constant 0 : index
    %10 = vector.load %arg14[%c0_13, %c0_14] : memref<64x128xf32, #tpu.memory_space<vmem>>, vector<8x128xf32>
    %cst_15 = arith.constant dense<0.000000e+00> : vector<8x128xf32>
    %11 = tpu.matmul %8, %7, %cst_15 {dimension_numbers = #tpu.dot_dimension_numbers<[1], [0], [0], [1], [0, 0, 1, 1], [], []>} : vector<8x32xf32>, vector<32x128xf32>, vector<8x128xf32> -> vector<8x128xf32>
    %12 = arith.addf %10, %11 : vector<8x128xf32>
    %13 = arith.negf %12 : vector<8x128xf32>
    %14 = math.exp %13 : vector<8x128xf32>
    %cst_16 = arith.constant 1.000000e+00 : f32
    %15 = vector.broadcast %cst_16 : f32 to vector<8x128xf32>
    %16 = arith.addf %15, %14 : vector<8x128xf32>
    %17 = arith.divf %15, %16 : vector<8x128xf32>
    %18 = math.tanh %12 : vector<8x128xf32>
    %19 = vector.extract_strided_slice %17 {offsets = [0, 0], sizes = [8, 32], strides = [1, 1]} : vector<8x128xf32> to vector<8x32xf32>
    %20 = vector.extract_strided_slice %17 {offsets = [0, 32], sizes = [8, 32], strides = [1, 1]} : vector<8x128xf32> to vector<8x32xf32>
    %21 = vector.extract_strided_slice %18 {offsets = [0, 64], sizes = [8, 32], strides = [1, 1]} : vector<8x128xf32> to vector<8x32xf32>
    %22 = vector.extract_strided_slice %17 {offsets = [0, 96], sizes = [8, 32], strides = [1, 1]} : vector<8x128xf32> to vector<8x32xf32>
    %23 = arith.mulf %20, %9 : vector<8x32xf32>
    %24 = arith.mulf %19, %21 : vector<8x32xf32>
    %25 = arith.addf %23, %24 : vector<8x32xf32>
    %26 = math.tanh %25 : vector<8x32xf32>
    %27 = arith.mulf %22, %26 : vector<8x32xf32>
    %c8 = arith.constant 8 : index
    %c0_17 = arith.constant 0 : index
    %28 = vector.load %arg14[%c8, %c0_17] : memref<64x128xf32, #tpu.memory_space<vmem>>, vector<8x128xf32>
    %cst_18 = arith.constant dense<0.000000e+00> : vector<8x128xf32>
    %29 = tpu.matmul %27, %7, %cst_18 {dimension_numbers = #tpu.dot_dimension_numbers<[1], [0], [0], [1], [0, 0, 1, 1], [], []>} : vector<8x32xf32>, vector<32x128xf32>, vector<8x128xf32> -> vector<8x128xf32>
    %30 = arith.addf %28, %29 : vector<8x128xf32>
    %31 = arith.negf %30 : vector<8x128xf32>
    %32 = math.exp %31 : vector<8x128xf32>
    %cst_19 = arith.constant 1.000000e+00 : f32
    %33 = vector.broadcast %cst_19 : f32 to vector<8x128xf32>
    %34 = arith.addf %33, %32 : vector<8x128xf32>
    %35 = arith.divf %33, %34 : vector<8x128xf32>
    %36 = math.tanh %30 : vector<8x128xf32>
    %37 = vector.extract_strided_slice %35 {offsets = [0, 0], sizes = [8, 32], strides = [1, 1]} : vector<8x128xf32> to vector<8x32xf32>
    %38 = vector.extract_strided_slice %35 {offsets = [0, 32], sizes = [8, 32], strides = [1, 1]} : vector<8x128xf32> to vector<8x32xf32>
    %39 = vector.extract_strided_slice %36 {offsets = [0, 64], sizes = [8, 32], strides = [1, 1]} : vector<8x128xf32> to vector<8x32xf32>
    %40 = vector.extract_strided_slice %35 {offsets = [0, 96], sizes = [8, 32], strides = [1, 1]} : vector<8x128xf32> to vector<8x32xf32>
    %41 = arith.mulf %38, %25 : vector<8x32xf32>
    %42 = arith.mulf %37, %39 : vector<8x32xf32>
    %43 = arith.addf %41, %42 : vector<8x32xf32>
    %44 = math.tanh %43 : vector<8x32xf32>
    %45 = arith.mulf %40, %44 : vector<8x32xf32>
    %c16 = arith.constant 16 : index
    %c0_20 = arith.constant 0 : index
    %46 = vector.load %arg14[%c16, %c0_20] : memref<64x128xf32, #tpu.memory_space<vmem>>, vector<8x128xf32>
    %cst_21 = arith.constant dense<0.000000e+00> : vector<8x128xf32>
    %47 = tpu.matmul %45, %7, %cst_21 {dimension_numbers = #tpu.dot_dimension_numbers<[1], [0], [0], [1], [0, 0, 1, 1], [], []>} : vector<8x32xf32>, vector<32x128xf32>, vector<8x128xf32> -> vector<8x128xf32>
    %48 = arith.addf %46, %47 : vector<8x128xf32>
    %49 = arith.negf %48 : vector<8x128xf32>
    %50 = math.exp %49 : vector<8x128xf32>
    %cst_22 = arith.constant 1.000000e+00 : f32
    %51 = vector.broadcast %cst_22 : f32 to vector<8x128xf32>
    %52 = arith.addf %51, %50 : vector<8x128xf32>
    %53 = arith.divf %51, %52 : vector<8x128xf32>
    %54 = math.tanh %48 : vector<8x128xf32>
    %55 = vector.extract_strided_slice %53 {offsets = [0, 0], sizes = [8, 32], strides = [1, 1]} : vector<8x128xf32> to vector<8x32xf32>
    %56 = vector.extract_strided_slice %53 {offsets = [0, 32], sizes = [8, 32], strides = [1, 1]} : vector<8x128xf32> to vector<8x32xf32>
    %57 = vector.extract_strided_slice %54 {offsets = [0, 64], sizes = [8, 32], strides = [1, 1]} : vector<8x128xf32> to vector<8x32xf32>
    %58 = vector.extract_strided_slice %53 {offsets = [0, 96], sizes = [8, 32], strides = [1, 1]} : vector<8x128xf32> to vector<8x32xf32>
    %59 = arith.mulf %56, %43 : vector<8x32xf32>
    %60 = arith.mulf %55, %57 : vector<8x32xf32>
    %61 = arith.addf %59, %60 : vector<8x32xf32>
    %62 = math.tanh %61 : vector<8x32xf32>
    %63 = arith.mulf %58, %62 : vector<8x32xf32>
    %c24 = arith.constant 24 : index
    %c0_23 = arith.constant 0 : index
    %64 = vector.load %arg14[%c24, %c0_23] : memref<64x128xf32, #tpu.memory_space<vmem>>, vector<8x128xf32>
    %cst_24 = arith.constant dense<0.000000e+00> : vector<8x128xf32>
    %65 = tpu.matmul %63, %7, %cst_24 {dimension_numbers = #tpu.dot_dimension_numbers<[1], [0], [0], [1], [0, 0, 1, 1], [], []>} : vector<8x32xf32>, vector<32x128xf32>, vector<8x128xf32> -> vector<8x128xf32>
    %66 = arith.addf %64, %65 : vector<8x128xf32>
    %67 = arith.negf %66 : vector<8x128xf32>
    %68 = math.exp %67 : vector<8x128xf32>
    %cst_25 = arith.constant 1.000000e+00 : f32
    %69 = vector.broadcast %cst_25 : f32 to vector<8x128xf32>
    %70 = arith.addf %69, %68 : vector<8x128xf32>
    %71 = arith.divf %69, %70 : vector<8x128xf32>
    %72 = math.tanh %66 : vector<8x128xf32>
    %73 = vector.extract_strided_slice %71 {offsets = [0, 0], sizes = [8, 32], strides = [1, 1]} : vector<8x128xf32> to vector<8x32xf32>
    %74 = vector.extract_strided_slice %71 {offsets = [0, 32], sizes = [8, 32], strides = [1, 1]} : vector<8x128xf32> to vector<8x32xf32>
    %75 = vector.extract_strided_slice %72 {offsets = [0, 64], sizes = [8, 32], strides = [1, 1]} : vector<8x128xf32> to vector<8x32xf32>
    %76 = vector.extract_strided_slice %71 {offsets = [0, 96], sizes = [8, 32], strides = [1, 1]} : vector<8x128xf32> to vector<8x32xf32>
    %77 = arith.mulf %74, %61 : vector<8x32xf32>
    %78 = arith.mulf %73, %75 : vector<8x32xf32>
    %79 = arith.addf %77, %78 : vector<8x32xf32>
    %80 = math.tanh %79 : vector<8x32xf32>
    %81 = arith.mulf %76, %80 : vector<8x32xf32>
    %c32 = arith.constant 32 : index
    %c0_26 = arith.constant 0 : index
    %82 = vector.load %arg14[%c32, %c0_26] : memref<64x128xf32, #tpu.memory_space<vmem>>, vector<8x128xf32>
    %cst_27 = arith.constant dense<0.000000e+00> : vector<8x128xf32>
    %83 = tpu.matmul %81, %7, %cst_27 {dimension_numbers = #tpu.dot_dimension_numbers<[1], [0], [0], [1], [0, 0, 1, 1], [], []>} : vector<8x32xf32>, vector<32x128xf32>, vector<8x128xf32> -> vector<8x128xf32>
    %84 = arith.addf %82, %83 : vector<8x128xf32>
    %85 = arith.negf %84 : vector<8x128xf32>
    %86 = math.exp %85 : vector<8x128xf32>
    %cst_28 = arith.constant 1.000000e+00 : f32
    %87 = vector.broadcast %cst_28 : f32 to vector<8x128xf32>
    %88 = arith.addf %87, %86 : vector<8x128xf32>
    %89 = arith.divf %87, %88 : vector<8x128xf32>
    %90 = math.tanh %84 : vector<8x128xf32>
    %91 = vector.extract_strided_slice %89 {offsets = [0, 0], sizes = [8, 32], strides = [1, 1]} : vector<8x128xf32> to vector<8x32xf32>
    %92 = vector.extract_strided_slice %89 {offsets = [0, 32], sizes = [8, 32], strides = [1, 1]} : vector<8x128xf32> to vector<8x32xf32>
    %93 = vector.extract_strided_slice %90 {offsets = [0, 64], sizes = [8, 32], strides = [1, 1]} : vector<8x128xf32> to vector<8x32xf32>
    %94 = vector.extract_strided_slice %89 {offsets = [0, 96], sizes = [8, 32], strides = [1, 1]} : vector<8x128xf32> to vector<8x32xf32>
    %95 = arith.mulf %92, %79 : vector<8x32xf32>
    %96 = arith.mulf %91, %93 : vector<8x32xf32>
    %97 = arith.addf %95, %96 : vector<8x32xf32>
    %98 = math.tanh %97 : vector<8x32xf32>
    %99 = arith.mulf %94, %98 : vector<8x32xf32>
    %c40 = arith.constant 40 : index
    %c0_29 = arith.constant 0 : index
    %100 = vector.load %arg14[%c40, %c0_29] : memref<64x128xf32, #tpu.memory_space<vmem>>, vector<8x128xf32>
    %cst_30 = arith.constant dense<0.000000e+00> : vector<8x128xf32>
    %101 = tpu.matmul %99, %7, %cst_30 {dimension_numbers = #tpu.dot_dimension_numbers<[1], [0], [0], [1], [0, 0, 1, 1], [], []>} : vector<8x32xf32>, vector<32x128xf32>, vector<8x128xf32> -> vector<8x128xf32>
    %102 = arith.addf %100, %101 : vector<8x128xf32>
    %103 = arith.negf %102 : vector<8x128xf32>
    %104 = math.exp %103 : vector<8x128xf32>
    %cst_31 = arith.constant 1.000000e+00 : f32
    %105 = vector.broadcast %cst_31 : f32 to vector<8x128xf32>
    %106 = arith.addf %105, %104 : vector<8x128xf32>
    %107 = arith.divf %105, %106 : vector<8x128xf32>
    %108 = math.tanh %102 : vector<8x128xf32>
    %109 = vector.extract_strided_slice %107 {offsets = [0, 0], sizes = [8, 32], strides = [1, 1]} : vector<8x128xf32> to vector<8x32xf32>
    %110 = vector.extract_strided_slice %107 {offsets = [0, 32], sizes = [8, 32], strides = [1, 1]} : vector<8x128xf32> to vector<8x32xf32>
    %111 = vector.extract_strided_slice %108 {offsets = [0, 64], sizes = [8, 32], strides = [1, 1]} : vector<8x128xf32> to vector<8x32xf32>
    %112 = vector.extract_strided_slice %107 {offsets = [0, 96], sizes = [8, 32], strides = [1, 1]} : vector<8x128xf32> to vector<8x32xf32>
    %113 = arith.mulf %110, %97 : vector<8x32xf32>
    %114 = arith.mulf %109, %111 : vector<8x32xf32>
    %115 = arith.addf %113, %114 : vector<8x32xf32>
    %116 = math.tanh %115 : vector<8x32xf32>
    %117 = arith.mulf %112, %116 : vector<8x32xf32>
    %c48 = arith.constant 48 : index
    %c0_32 = arith.constant 0 : index
    %118 = vector.load %arg14[%c48, %c0_32] : memref<64x128xf32, #tpu.memory_space<vmem>>, vector<8x128xf32>
    %cst_33 = arith.constant dense<0.000000e+00> : vector<8x128xf32>
    %119 = tpu.matmul %117, %7, %cst_33 {dimension_numbers = #tpu.dot_dimension_numbers<[1], [0], [0], [1], [0, 0, 1, 1], [], []>} : vector<8x32xf32>, vector<32x128xf32>, vector<8x128xf32> -> vector<8x128xf32>
    %120 = arith.addf %118, %119 : vector<8x128xf32>
    %121 = arith.negf %120 : vector<8x128xf32>
    %122 = math.exp %121 : vector<8x128xf32>
    %cst_34 = arith.constant 1.000000e+00 : f32
    %123 = vector.broadcast %cst_34 : f32 to vector<8x128xf32>
    %124 = arith.addf %123, %122 : vector<8x128xf32>
    %125 = arith.divf %123, %124 : vector<8x128xf32>
    %126 = math.tanh %120 : vector<8x128xf32>
    %127 = vector.extract_strided_slice %125 {offsets = [0, 0], sizes = [8, 32], strides = [1, 1]} : vector<8x128xf32> to vector<8x32xf32>
    %128 = vector.extract_strided_slice %125 {offsets = [0, 32], sizes = [8, 32], strides = [1, 1]} : vector<8x128xf32> to vector<8x32xf32>
    %129 = vector.extract_strided_slice %126 {offsets = [0, 64], sizes = [8, 32], strides = [1, 1]} : vector<8x128xf32> to vector<8x32xf32>
    %130 = vector.extract_strided_slice %125 {offsets = [0, 96], sizes = [8, 32], strides = [1, 1]} : vector<8x128xf32> to vector<8x32xf32>
    %131 = arith.mulf %128, %115 : vector<8x32xf32>
    %132 = arith.mulf %127, %129 : vector<8x32xf32>
    %133 = arith.addf %131, %132 : vector<8x32xf32>
    %134 = math.tanh %133 : vector<8x32xf32>
    %135 = arith.mulf %130, %134 : vector<8x32xf32>
    %c56 = arith.constant 56 : index
    %c0_35 = arith.constant 0 : index
    %136 = vector.load %arg14[%c56, %c0_35] : memref<64x128xf32, #tpu.memory_space<vmem>>, vector<8x128xf32>
    %cst_36 = arith.constant dense<0.000000e+00> : vector<8x128xf32>
    %137 = tpu.matmul %135, %7, %cst_36 {dimension_numbers = #tpu.dot_dimension_numbers<[1], [0], [0], [1], [0, 0, 1, 1], [], []>} : vector<8x32xf32>, vector<32x128xf32>, vector<8x128xf32> -> vector<8x128xf32>
    %138 = arith.addf %136, %137 : vector<8x128xf32>
    %139 = arith.negf %138 : vector<8x128xf32>
    %140 = math.exp %139 : vector<8x128xf32>
    %cst_37 = arith.constant 1.000000e+00 : f32
    %141 = vector.broadcast %cst_37 : f32 to vector<8x128xf32>
    %142 = arith.addf %141, %140 : vector<8x128xf32>
    %143 = arith.divf %141, %142 : vector<8x128xf32>
    %144 = math.tanh %138 : vector<8x128xf32>
    %145 = vector.extract_strided_slice %143 {offsets = [0, 0], sizes = [8, 32], strides = [1, 1]} : vector<8x128xf32> to vector<8x32xf32>
    %146 = vector.extract_strided_slice %143 {offsets = [0, 32], sizes = [8, 32], strides = [1, 1]} : vector<8x128xf32> to vector<8x32xf32>
    %147 = vector.extract_strided_slice %144 {offsets = [0, 64], sizes = [8, 32], strides = [1, 1]} : vector<8x128xf32> to vector<8x32xf32>
    %148 = vector.extract_strided_slice %143 {offsets = [0, 96], sizes = [8, 32], strides = [1, 1]} : vector<8x128xf32> to vector<8x32xf32>
    %149 = arith.mulf %146, %133 : vector<8x32xf32>
    %150 = arith.mulf %145, %147 : vector<8x32xf32>
    %151 = arith.addf %149, %150 : vector<8x32xf32>
    %152 = math.tanh %151 : vector<8x32xf32>
    %153 = arith.mulf %148, %152 : vector<8x32xf32>
    %c0_38 = arith.constant 0 : index
    %c0_39 = arith.constant 0 : index
    %154 = vector.load %arg12[%c0_38, %c0_39] : memref<8x32xf32, #tpu.memory_space<vmem>>, vector<8x32xf32>
    tpu.vector_store %arg12[%c0_38, %c0_39], %153 {strides = array<i32>} : memref<8x32xf32, #tpu.memory_space<vmem>>, vector<8x32xf32>,
    %c0_40 = arith.constant 0 : index
    %c0_41 = arith.constant 0 : index
    %155 = vector.load %arg13[%c0_40, %c0_41] : memref<8x32xf32, #tpu.memory_space<vmem>>, vector<8x32xf32>
    tpu.vector_store %arg13[%c0_40, %c0_41], %151 {strides = array<i32>} : memref<8x32xf32, #tpu.memory_space<vmem>>, vector<8x32xf32>,
    %c0_42 = arith.constant 0 : index
    %c0_43 = arith.constant 0 : index
    %156 = vector.load %arg7[%c0_42, %c0_43] : memref<32x256xf32, #tpu.memory_space<vmem>>, vector<32x256xf32>
    %cst_44 = arith.constant dense<0.000000e+00> : vector<8x256xf32>
    %157 = tpu.matmul %153, %156, %cst_44 {dimension_numbers = #tpu.dot_dimension_numbers<[1], [0], [0], [1], [0, 0, 1, 1], [], []>} : vector<8x32xf32>, vector<32x256xf32>, vector<8x256xf32> -> vector<8x256xf32>
    %c0_45 = arith.constant 0 : index
    %c0_46 = arith.constant 0 : index
    %158 = vector.load %arg8[%c0_45, %c0_46] : memref<1x256xf32, #tpu.memory_space<vmem>>, vector<1x256xf32>
    %159 = vector.broadcast %158 : vector<1x256xf32> to vector<8x256xf32>
    %160 = arith.addf %157, %159 : vector<8x256xf32>
    %cst_47 = arith.constant 0.000000e+00 : f32
    %161 = vector.broadcast %cst_47 : f32 to vector<8x256xf32>
    %162 = arith.maximumf %160, %161 : vector<8x256xf32>
    %c0_48 = arith.constant 0 : index
    %c0_49 = arith.constant 0 : index
    %163 = vector.load %arg9[%c0_48, %c0_49] : memref<256x128xf32, #tpu.memory_space<vmem>>, vector<256x128xf32>
    %cst_50 = arith.constant dense<0.000000e+00> : vector<8x128xf32>
    %164 = tpu.matmul %162, %163, %cst_50 {dimension_numbers = #tpu.dot_dimension_numbers<[1], [0], [0], [1], [0, 0, 1, 1], [], []>} : vector<8x256xf32>, vector<256x128xf32>, vector<8x128xf32> -> vector<8x128xf32>
    %c0_51 = arith.constant 0 : index
    %c0_52 = arith.constant 0 : index
    %165 = vector.load %arg10[%c0_51, %c0_52] : memref<1x128xf32, #tpu.memory_space<vmem>>, vector<1x128xf32>
    %166 = vector.broadcast %165 : vector<1x128xf32> to vector<8x128xf32>
    %167 = arith.addf %164, %166 : vector<8x128xf32>
    %c0_53 = arith.constant 0 : index
    %168 = memref.load %arg0[%c0_53] : memref<1xf32, #tpu.memory_space<smem>>
    %169 = tpu.iota {dimensions = array<i32: 1>} : vector<8x128xi32>
    %c8_i32 = arith.constant 8 : i32
    %170 = vector.broadcast %c8_i32 : i32 to vector<8x128xi32>
    %171 = arith.cmpi slt, %169, %170 : vector<8x128xi32>
    %c8_i32_54 = arith.constant 8 : i32
    %172 = vector.broadcast %c8_i32_54 : i32 to vector<8x128xi32>
    %173 = arith.cmpi sge, %169, %172 : vector<8x128xi32>
    %c12_i32 = arith.constant 12 : i32
    %174 = vector.broadcast %c12_i32 : i32 to vector<8x128xi32>
    %175 = arith.cmpi slt, %169, %174 : vector<8x128xi32>
    %176 = arith.andi %173, %175 : vector<8x128xi1>
    %c12_i32_55 = arith.constant 12 : i32
    %177 = vector.broadcast %c12_i32_55 : i32 to vector<8x128xi32>
    %178 = arith.cmpi eq, %169, %177 : vector<8x128xi32>
    %c13_i32 = arith.constant 13 : i32
    %179 = vector.broadcast %c13_i32 : i32 to vector<8x128xi32>
    %180 = arith.cmpi eq, %169, %179 : vector<8x128xi32>
    %cst_56 = arith.constant -1.000000e+30 : f32
    %181 = vector.broadcast %cst_56 : f32 to vector<8x128xf32>
    %182 = arith.select %171, %167, %181 : vector<8x128xi1>, vector<8x128xf32>
    %cst_57 = arith.constant dense<0xFF800000> : vector<8xf32>
    %183 = vector.multi_reduction <maximumf>, %182, %cst_57 [1] : vector<8x128xf32> to vector<8xf32>
    %184 = vector.shape_cast %183 : vector<8xf32> to vector<8x1xf32>
    %185 = vector.broadcast %184 : vector<8x1xf32> to vector<8x128xf32>
    %186 = arith.subf %182, %185 : vector<8x128xf32>
    %187 = math.exp %186 : vector<8x128xf32>
    %cst_58 = arith.constant 0.000000e+00 : f32
    %188 = vector.broadcast %cst_58 : f32 to vector<8x128xf32>
    %189 = arith.select %171, %187, %188 : vector<8x128xi1>, vector<8x128xf32>
    %cst_59 = arith.constant dense<0.000000e+00> : vector<8xf32>
    %190 = vector.multi_reduction <add>, %189, %cst_59 [1] : vector<8x128xf32> to vector<8xf32>
    %191 = vector.shape_cast %190 : vector<8xf32> to vector<8x1xf32>
    %192 = tpu.reciprocal %191 {approx = true} : vector<8x1xf32> -> vector<8x1xf32>
    %193 = vector.broadcast %192 : vector<8x1xf32> to vector<8x128xf32>
    %194 = arith.mulf %189, %193 : vector<8x128xf32>
    %cst_60 = arith.constant -1.000000e+30 : f32
    %195 = vector.broadcast %cst_60 : f32 to vector<8x128xf32>
    %196 = arith.select %176, %167, %195 : vector<8x128xi1>, vector<8x128xf32>
    %cst_61 = arith.constant dense<0xFF800000> : vector<8xf32>
    %197 = vector.multi_reduction <maximumf>, %196, %cst_61 [1] : vector<8x128xf32> to vector<8xf32>
    %198 = vector.shape_cast %197 : vector<8xf32> to vector<8x1xf32>
    %199 = vector.broadcast %198 : vector<8x1xf32> to vector<8x128xf32>
    %200 = arith.subf %196, %199 : vector<8x128xf32>
    %201 = math.exp %200 : vector<8x128xf32>
    %cst_62 = arith.constant 0.000000e+00 : f32
    %202 = vector.broadcast %cst_62 : f32 to vector<8x128xf32>
    %203 = arith.select %176, %201, %202 : vector<8x128xi1>, vector<8x128xf32>
    %cst_63 = arith.constant dense<0.000000e+00> : vector<8xf32>
    %204 = vector.multi_reduction <add>, %203, %cst_63 [1] : vector<8x128xf32> to vector<8xf32>
    %205 = vector.shape_cast %204 : vector<8xf32> to vector<8x1xf32>
    %206 = tpu.reciprocal %205 {approx = true} : vector<8x1xf32> -> vector<8x1xf32>
    %207 = vector.broadcast %206 : vector<8x1xf32> to vector<8x128xf32>
    %208 = arith.mulf %203, %207 : vector<8x128xf32>
    %209 = arith.negf %167 : vector<8x128xf32>
    %210 = math.exp %209 : vector<8x128xf32>
    %cst_64 = arith.constant 1.000000e+00 : f32
    %211 = vector.broadcast %cst_64 : f32 to vector<8x128xf32>
    %212 = arith.addf %211, %210 : vector<8x128xf32>
    %213 = arith.divf %211, %212 : vector<8x128xf32>
    %cst_65 = arith.constant 1.000000e-10 : f32
    %214 = arith.subf %168, %cst_65 : f32
    %215 = vector.broadcast %214 : f32 to vector<8x128xf32>
    %216 = arith.mulf %213, %215 : vector<8x128xf32>
    %cst_66 = arith.constant 1.000000e-10 : f32
    %217 = vector.broadcast %cst_66 : f32 to vector<8x128xf32>
    %218 = arith.addf %216, %217 : vector<8x128xf32>
    %cst_67 = arith.constant 0.000000e+00 : f32
    %219 = vector.broadcast %cst_67 : f32 to vector<8x128xf32>
    %220 = arith.maximumf %167, %219 : vector<8x128xf32>
    %221 = vector.broadcast %cst_67 : f32 to vector<8x128xf32>
    %222 = arith.subf %167, %221 : vector<8x128xf32>
    %223 = arith.cmpf one, %222, %222 : vector<8x128xf32>
    %224 = vector.broadcast %cst_67 : f32 to vector<8x128xf32>
    %225 = arith.addf %167, %224 : vector<8x128xf32>
    %226 = math.absf %222 : vector<8x128xf32>
    %cst_68 = arith.constant 0.000000e+00 : f32
    %227 = vector.broadcast %cst_68 : f32 to vector<8x128xf32>
    %228 = arith.subf %227, %226 : vector<8x128xf32>
    %229 = math.exp %228 : vector<8x128xf32>
    %230 = math.log1p %229 : vector<8x128xf32>
    %231 = arith.addf %220, %230 : vector<8x128xf32>
    %232 = arith.select %223, %225, %231 : vector<8x128xi1>, vector<8x128xf32>
    %cst_69 = arith.constant 0.000000e+00 : f32
    %233 = vector.broadcast %cst_69 : f32 to vector<8x128xf32>
    %234 = arith.select %180, %232, %233 : vector<8x128xi1>, vector<8x128xf32>
    %235 = arith.select %178, %218, %234 : vector<8x128xi1>, vector<8x128xf32>
    %236 = arith.select %176, %208, %235 : vector<8x128xi1>, vector<8x128xf32>
    %237 = arith.select %171, %194, %236 : vector<8x128xi1>, vector<8x128xf32>
    %c0_70 = arith.constant 0 : index
    %c0_71 = arith.constant 0 : index
    %238 = vector.load %arg11[%c0_70, %c0_71] : memref<8x128xf32, #tpu.memory_space<vmem>>, vector<8x128xf32>
    tpu.vector_store %arg11[%c0_70, %c0_71], %237 {strides = array<i32>} : memref<8x128xf32, #tpu.memory_space<vmem>>, vector<8x128xf32>,
    return
  }
}

</mosaic_0001>

<llo_original>
// kernel: tpu_custom_call.1
$region0: #{tpu_custom_call.1}
  #allocation0 [shape = 'u32[]', space=smem, size = 0x4, offset = 0x4, fixed_abs, tag = 'smem constant byte address 0x4 - core index']
  #allocation1 [shape = 'u32[144,128]{1,0:T(1,128)}', space=vmem, size = 0x12000, scoped, tag = 'internal scratch']
  #allocation2 [shape = 'f32[64,128]{1,0:T(8,128)}', space=vmem, size = 0x8000, scoped, tag = 'scratch operand']
  #allocation3 [shape = 'f32[1]{0:T(128)S(6)}', space=smem, size = 0x200, scoped, tag = 'scoped memory for tpu_custom_call.1']
  %s0 = inlined_call_operand.<no memory space> [shape: f32[1], index: 0, kind: input, shape index: {}]
  %s1 = inlined_call_operand.vmem [shape: f32[64,16], index: 1, kind: input, shape index: {}]
  %s2 = inlined_call_operand.hbm [shape: f32[16,128], index: 2, kind: input, shape index: {}]
  %s3 = inlined_call_operand.vmem [shape: f32[32,128], index: 3, kind: input, shape index: {}]
  %s4 = inlined_call_operand.hbm [shape: f32[1,128], index: 4, kind: input, shape index: {}]
  %s5 = inlined_call_operand.vmem [shape: f32[8,32], index: 5, kind: input, shape index: {}]
  %s6 = inlined_call_operand.hbm [shape: f32[8,32], index: 6, kind: input, shape index: {}]
  %s7 = inlined_call_operand.vmem [shape: f32[32,256], index: 7, kind: input, shape index: {}]
  %s8 = inlined_call_operand.vmem [shape: f32[1,256], index: 8, kind: input, shape index: {}]
  %s9 = inlined_call_operand.hbm [shape: f32[256,128], index: 9, kind: input, shape index: {}]
  %s10 = inlined_call_operand.vmem [shape: f32[1,128], index: 10, kind: input, shape index: {}]
  %s11 = inlined_call_operand.hbm [shape: f32[8,128], index: 11, kind: output, shape index: {0}]
  %s12 = inlined_call_operand.hbm [shape: f32[8,32], index: 12, kind: output, shape index: {1}]
  %s13 = inlined_call_operand.hbm [shape: f32[8,32], index: 13, kind: output, shape index: {2}]
  %14 = xla_tuple %s11, %s12, %s13
  %s15 = sld [smem:[#allocation0]]
  $region86: #{tpu_custom_call.1} parent=0
    _
  %s17 = ssub.s32 1, %s15
  %s18 = scalar_select 0, %s17, %s15
  %19 = sst [smem:[#allocation3]] %s0
  $region1: #{tpu_custom_call.1} parent=0
    #allocation4 [shape = 'u8[8192]{0}', space=vmem, size = 0x2000, scoped, tag = 'input window, operand 2, single buffered']
    #allocation5 [shape = 's32[1]{0}', space=sflag, size = 0x4, scoped, tag = 'scoped memory for tpu_custom_call.1']
    #allocation6 [shape = 's32[1]{0}', space=sflag, size = 0x4, scoped, tag = 'scoped memory for tpu_custom_call.1']
    #allocation7 [shape = 'u8[512]{0}', space=vmem, size = 0x400, scoped, tag = 'input window, operand 4, single buffered']
    #allocation8 [shape = 's32[1]{0}', space=sflag, size = 0x4, scoped, tag = 'scoped memory for tpu_custom_call.1']
    #allocation9 [shape = 'u8[4096]{0}', space=vmem, size = 0x1000, scoped, tag = 'input window, operand 6, single buffered']
    #allocation10 [shape = 'u8[131072]{0}', space=vmem, size = 0x20000, scoped, tag = 'input window, operand 9, single buffered']
    #allocation11 [shape = 's32[1]{0}', space=sflag, size = 0x4, scoped, tag = 'scoped memory for tpu_custom_call.1']
    #allocation12 [shape = 'u8[4096]{0}', space=vmem, size = 0x1000, scoped, tag = 'output window, operand 0, single buffered']
    #allocation13 [shape = 'u8[4096]{0}', space=vmem, size = 0x1000, scoped, tag = 'output window, operand 1, single buffered']
    #allocation14 [shape = 's32[1]{0}', space=sflag, size = 0x4, scoped, tag = 'scoped memory for tpu_custom_call.1']
    #allocation15 [shape = 'u8[4096]{0}', space=vmem, size = 0x1000, scoped, tag = 'output window, operand 2, single buffered']
    %20 = vsyncpa [#allocation5], 0
    %21 = vsyncpa [#allocation8], 0
    %22 = vsyncpa [#allocation11], 0
    %23 = vsyncpa [#allocation6], 0
    %24 = vsyncpa [#allocation14], 0
    // Predicated region
    $region2: #{tpu_custom_call.1} parent=1 // pred_check
      _
    $region3: #{tpu_custom_call.1} parent=1 // pred_check_branch
      %26 = sbr.rel (0) target = $region5
    $region4: #{tpu_custom_call.1} parent=1 // pred_region
      _
    $region5: #{tpu_custom_call.1} parent=1 // pred_fallthru
      _
    // Predicated region
    $region6: #{tpu_custom_call.1} parent=1 // pred_check
      _
    $region7: #{tpu_custom_call.1} parent=1 // pred_check_branch
      %28 = sbr.rel (0) target = $region9
    $region8: #{tpu_custom_call.1} parent=1 // pred_region
      _
    $region9: #{tpu_custom_call.1} parent=1 // pred_fallthru
      _
    // Predicated region
    $region10: #{tpu_custom_call.1} parent=1 // pred_check
      _
    $region11: #{tpu_custom_call.1} parent=1 // pred_check_branch
      %30 = sbr.rel (0) target = $region13
    $region12: #{tpu_custom_call.1} parent=1 // pred_region
      %s32 = ssub.s32 256, 256
      %33 = vsyncadd [#allocation5], %s32
      %s34 = sshll.u32 [#allocation4], 4
      %s35 = int_to_ptr.vmem [resolvable:$true] %s34
      %40 = dma.hbm_to_vmem [thread:$0]  %s2, 256, %s35, [#allocation5], 128, 128, 8
    $region13: #{tpu_custom_call.1} parent=1 // pred_fallthru
      _
    // Predicated region
    $region14: #{tpu_custom_call.1} parent=1 // pred_check
      _
    $region15: #{tpu_custom_call.1} parent=1 // pred_check_branch
      %42 = sbr.rel (0) target = $region17
    $region16: #{tpu_custom_call.1} parent=1 // pred_region
      _
    $region17: #{tpu_custom_call.1} parent=1 // pred_fallthru
      _
    // Predicated region
    $region18: #{tpu_custom_call.1} parent=1 // pred_check
      _
    $region19: #{tpu_custom_call.1} parent=1 // pred_check_branch
      %44 = sbr.rel (0) target = $region21
    $region20: #{tpu_custom_call.1} parent=1 // pred_region
      %s46 = ssub.s32 16, 16
      %47 = vsyncadd [#allocation8], %s46
      %s49 = sshll.u32 [#allocation7], 4
      %s50 = int_to_ptr.vmem [resolvable:$true] %s49
      %52 = dma.hbm_to_vmem [thread:$0]  %s4, 16, %s50, [#allocation8]
    $region21: #{tpu_custom_call.1} parent=1 // pred_fallthru
      _
    // Predicated region
    $region22: #{tpu_custom_call.1} parent=1 // pred_check
      _
    $region23: #{tpu_custom_call.1} parent=1 // pred_check_branch
      %54 = sbr.rel (0) target = $region25
    $region24: #{tpu_custom_call.1} parent=1 // pred_region
      _
    $region25: #{tpu_custom_call.1} parent=1 // pred_fallthru
      _
    // Predicated region
    $region26: #{tpu_custom_call.1} parent=1 // pred_check
      _
    $region27: #{tpu_custom_call.1} parent=1 // pred_check_branch
      %56 = sbr.rel (0) target = $region29
    $region28: #{tpu_custom_call.1} parent=1 // pred_region
      %s58 = ssub.s32 128, 128
      %59 = vsyncadd [#allocation8], %s58
      %s61 = sshll.u32 [#allocation9], 4
      %s62 = int_to_ptr.vmem [resolvable:$true] %s61
      %64 = dma.hbm_to_vmem [thread:$0]  %s6, 128, %s62, [#allocation8]
    $region29: #{tpu_custom_call.1} parent=1 // pred_fallthru
      _
    // Predicated region
    $region30: #{tpu_custom_call.1} parent=1 // pred_check
      _
    $region31: #{tpu_custom_call.1} parent=1 // pred_check_branch
      %66 = sbr.rel (0) target = $region33
    $region32: #{tpu_custom_call.1} parent=1 // pred_region
      _
    $region33: #{tpu_custom_call.1} parent=1 // pred_fallthru
      _
    // Predicated region
    $region34: #{tpu_custom_call.1} parent=1 // pred_check
      _
    $region35: #{tpu_custom_call.1} parent=1 // pred_check_branch
      %68 = sbr.rel (0) target = $region37
    $region36: #{tpu_custom_call.1} parent=1 // pred_region
      _
    $region37: #{tpu_custom_call.1} parent=1 // pred_fallthru
      _
    // Predicated region
    $region38: #{tpu_custom_call.1} parent=1 // pred_check
      _
    $region39: #{tpu_custom_call.1} parent=1 // pred_check_branch
      %70 = sbr.rel (0) target = $region41
    $region40: #{tpu_custom_call.1} parent=1 // pred_region
      %s72 = ssub.s32 4096, 4096
      %73 = vsyncadd [#allocation11], %s72
      %s74 = sshll.u32 [#allocation10], 4
      %s75 = int_to_ptr.vmem [resolvable:$true] %s74
      %80 = dma.hbm_to_vmem [thread:$0]  %s9, 4096, %s75, [#allocation11], 128, 128, 8
    $region41: #{tpu_custom_call.1} parent=1 // pred_fallthru
      _
    // Predicated region
    $region42: #{tpu_custom_call.1} parent=1 // pred_check
      _
    $region43: #{tpu_custom_call.1} parent=1 // pred_check_branch
      %82 = sbr.rel (0) target = $region45
    $region44: #{tpu_custom_call.1} parent=1 // pred_region
      _
    $region45: #{tpu_custom_call.1} parent=1 // pred_fallthru
      _
    // Predicated region
    $region46: #{tpu_custom_call.1} parent=1 // pred_check
      _
    $region47: #{tpu_custom_call.1} parent=1 // pred_check_branch
      %84 = sbr.rel (0) target = $region49
    $region48: #{tpu_custom_call.1} parent=1 // pred_region
      %85 = dma.done [#allocation5], 256
    $region49: #{tpu_custom_call.1} parent=1 // pred_fallthru
      _
    // Predicated region
    $region50: #{tpu_custom_call.1} parent=1 // pred_check
      _
    $region51: #{tpu_custom_call.1} parent=1 // pred_check_branch
      %87 = sbr.rel (0) target = $region53
    $region52: #{tpu_custom_call.1} parent=1 // pred_region
      %88 = dma.done [#allocation8], 16
    $region53: #{tpu_custom_call.1} parent=1 // pred_fallthru
      _
    // Predicated region
    $region54: #{tpu_custom_call.1} parent=1 // pred_check
      _
    $region55: #{tpu_custom_call.1} parent=1 // pred_check_branch
      %90 = sbr.rel (0) target = $region57
    $region56: #{tpu_custom_call.1} parent=1 // pred_region
      %91 = dma.done [#allocation8], 128
    $region57: #{tpu_custom_call.1} parent=1 // pred_fallthru
      _
    // Predicated region
    $region58: #{tpu_custom_call.1} parent=1 // pred_check
      _
    $region59: #{tpu_custom_call.1} parent=1 // pred_check_branch
      %93 = sbr.rel (0) target = $region61
    $region60: #{tpu_custom_call.1} parent=1 // pred_region
      %94 = dma.done [#allocation11], 4096
    $region61: #{tpu_custom_call.1} parent=1 // pred_fallthru
      _
    %v95 = vld [vmem:[%s1] sm:$0xff]
    %v96 = vld [vmem:[%s1 + $0x8] sm:$0xff]
    %v97 = vld [vmem:[%s1 + $0x10] sm:$0xff]
    %v98 = vld [vmem:[%s1 + $0x18] sm:$0xff]
    %v99 = vld [vmem:[%s1 + $0x20] sm:$0xff]
    %v100 = vld [vmem:[%s1 + $0x28] sm:$0xff]
    %v101 = vld [vmem:[%s1 + $0x30] sm:$0xff]
    %v102 = vld [vmem:[%s1 + $0x38] sm:$0xff]
    %v103 = vld [vmem:[#allocation4] sm:$0xff]
    %v104 = vld [vmem:[#allocation4 + $0x8] sm:$0xff]
    %v105 = vld [vmem:[#allocation7] sm:$0x1]
    %v107 = vlaneseq
    %v108 = vshrl.u32 %v107, 7
    %v109 = vsub.s32 0, %v108
    %v110 = vrot.slane %v105, %v109
    %vm112 = vcmask 130048
    %v114 = vsel %vm112, %v95, 0
    %v117 = vsel %vm112, %v96, 0
    %v120 = vsel %vm112, %v97, 0
    %v123 = vsel %vm112, %v98, 0
    %v126 = vsel %vm112, %v99, 0
    %v129 = vsel %vm112, %v100, 0
    %v132 = vsel %vm112, %v101, 0
    %v135 = vsel %vm112, %v102, 0
    %137 = vmatprep.subr.mxu0 0.0
    %138 = vmatpush1.msra.mxu0 %v103
    %139 = vmatprep.subr.mxu0 0.0
    %140 = vmatpush1.msra.mxu0 %v104
    %141 = vmatprep.subr.mxu0 0.0
    %142 = vmatpush1.msra.mxu0 0.0
    %143 = vmatprep.subr.mxu0 0.0
    %144 = vmatpush1.msra.mxu0 0.0
    %145 = vmatprep.subr.mxu0 0.0
    %146 = vmatpush1.msra.mxu0 0.0
    %147 = vmatprep.subr.mxu0 0.0
    %148 = vmatpush1.msra.mxu0 0.0
    %149 = vmatprep.subr.mxu0 0.0
    %150 = vmatpush1.msra.mxu0 0.0
    %151 = vmatprep.subr.mxu0 0.0
    %152 = vmatpush1.msra.mxu0 0.0
    %153 = vmatprep.subr.mxu0 0.0
    %154 = vmatpush1.msra.mxu0 0.0
    %155 = vmatprep.subr.mxu0 0.0
    %156 = vmatpush1.msra.mxu0 0.0
    %157 = vmatprep.subr.mxu0 0.0
    %158 = vmatpush1.msra.mxu0 0.0
    %159 = vmatprep.subr.mxu0 0.0
    %160 = vmatpush1.msra.mxu0 0.0
    %161 = vmatprep.subr.mxu0 0.0
    %162 = vmatpush1.msra.mxu0 0.0
    %163 = vmatprep.subr.mxu0 0.0
    %164 = vmatpush1.msra.mxu0 0.0
    %165 = vmatprep.subr.mxu0 0.0
    %166 = vmatpush1.msra.mxu0 0.0
    %167 = vmatprep.subr.mxu0 0.0
    %168 = vmatpush1.msra.mxu0 0.0
    %169 = vmatprep.subr.mxu0 0.0
    %170 = vmatpush1.msra.mxu0 0.0
    %171 = vmatprep.subr.mxu0 0.0
    %172 = vmatpush1.msra.mxu0 0.0
    %173 = vmatprep.subr.mxu0 0.0
    %174 = vmatpush1.msra.mxu0 0.0
    %175 = vmatprep.subr.mxu0 0.0
    %176 = vmatpush1.msra.mxu0 0.0
    %177 = vmatprep.subr.mxu0 0.0
    %178 = vmatpush1.msra.mxu0 0.0
    %179 = vmatprep.subr.mxu0 0.0
    %180 = vmatpush1.msra.mxu0 0.0
    %181 = vmatprep.subr.mxu0 0.0
    %182 = vmatpush1.msra.mxu0 0.0
    %183 = vmatprep.subr.mxu0 0.0
    %184 = vmatpush1.msra.mxu0 0.0
    %185 = vmatprep.subr.mxu0 0.0
    %186 = vmatpush1.msra.mxu0 0.0
    %187 = vmatprep.subr.mxu0 0.0
    %188 = vmatpush1.msra.mxu0 0.0
    %189 = vmatprep.subr.mxu0 0.0
    %190 = vmatpush1.msra.mxu0 0.0
    %191 = vmatprep.subr.mxu0 0.0
    %192 = vmatpush1.msra.mxu0 0.0
    %193 = vmatprep.subr.mxu0 0.0
    %194 = vmatpush1.msra.mxu0 0.0
    %195 = vmatprep.subr.mxu0 0.0
    %196 = vmatpush1.msra.mxu0 0.0
    %197 = vmatprep.subr.mxu0 0.0
    %198 = vmatpush1.msra.mxu0 0.0
    %199 = vmatprep.subr.mxu0 0.0
    %200 = vmatpush1.msra.mxu0 0.0
    %201 = vmatprep.mubr.f32.mxu0 0.0
    %202 = vmatmul.mubr.f32.gmra.mrb[0].mxu0 %v114
    %v203 = vpop.f32.mrb[0].mxu0
    %v204 = vadd.f32 %v110, %v203
    %v205 = vpop.f32.mrb[0].mxu0
    %206 = vmatprep.mubr.f32.mxu0 0.0
    %207 = vmatmul.mubr.f32.gmra.mrb[0].mxu0 %v117
    %v208 = vpop.f32.mrb[0].mxu0
    %v209 = vadd.f32 %v110, %v208
    %v210 = vpop.f32.mrb[0].mxu0
    %211 = vmatprep.mubr.f32.mxu0 0.0
    %212 = vmatmul.mubr.f32.gmra.mrb[0].mxu0 %v120
    %v213 = vpop.f32.mrb[0].mxu0
    %v214 = vadd.f32 %v110, %v213
    %v215 = vpop.f32.mrb[0].mxu0
    %216 = vmatprep.mubr.f32.mxu0 0.0
    %217 = vmatmul.mubr.f32.gmra.mrb[0].mxu0 %v123
    %v218 = vpop.f32.mrb[0].mxu0
    %v219 = vadd.f32 %v110, %v218
    %v220 = vpop.f32.mrb[0].mxu0
    %221 = vmatprep.mubr.f32.mxu0 0.0
    %222 = vmatmul.mubr.f32.gmra.mrb[0].mxu0 %v126
    %v223 = vpop.f32.mrb[0].mxu0
    %v224 = vadd.f32 %v110, %v223
    %v225 = vpop.f32.mrb[0].mxu0
    %226 = vmatprep.mubr.f32.mxu0 0.0
    %227 = vmatmul.mubr.f32.gmra.mrb[0].mxu0 %v129
    %v228 = vpop.f32.mrb[0].mxu0
    %v229 = vadd.f32 %v110, %v228
    %v230 = vpop.f32.mrb[0].mxu0
    %231 = vmatprep.mubr.f32.mxu0 0.0
    %232 = vmatmul.mubr.f32.gmra.mrb[0].mxu0 %v132
    %v233 = vpop.f32.mrb[0].mxu0
    %v234 = vadd.f32 %v110, %v233
    %v235 = vpop.f32.mrb[0].mxu0
    %236 = vmatprep.mubr.f32.mxu0 0.0
    %237 = vmatmul.mubr.f32.gmra.mrb[0].mxu0 %v135
    %v238 = vpop.f32.mrb[0].mxu0
    %v239 = vadd.f32 %v110, %v238
    %v240 = vpop.f32.mrb[0].mxu0
    %241 = vdwg.mxu0
    %242 = vst [vmem:[#allocation2] sm:$0xff] %v204
    %243 = vst [vmem:[#allocation2 + $0x8] sm:$0xff] %v209
    %244 = vst [vmem:[#allocation2 + $0x10] sm:$0xff] %v214
    %245 = vst [vmem:[#allocation2 + $0x18] sm:$0xff] %v219
    %246 = vst [vmem:[#allocation2 + $0x20] sm:$0xff] %v224
    %247 = vst [vmem:[#allocation2 + $0x28] sm:$0xff] %v229
    %248 = vst [vmem:[#allocation2 + $0x30] sm:$0xff] %v234
    %249 = vst [vmem:[#allocation2 + $0x38] sm:$0xff] %v239
    %v250 = vld [vmem:[%s3] sm:$0xff]
    %v251 = vld [vmem:[%s3 + $0x8] sm:$0xff]
    %v252 = vld [vmem:[%s3 + $0x10] sm:$0xff]
    %v253 = vld [vmem:[%s3 + $0x18] sm:$0xff]
    %v254 = vld [vmem:[%s5] sm:$0xff]
    %v255 = vld [vmem:[#allocation9] sm:$0xff]
    %v256 = vld [vmem:[#allocation2] sm:$0xff]
    %vm257 = vcmask 261120
    %v259 = vsel %vm257, %v254, 0
    %261 = vmatprep.subr.mxu0 0.0
    %262 = vmatpush1.msra.mxu0 %v250
    %263 = vmatprep.subr.mxu0 0.0
    %264 = vmatpush1.msra.mxu0 %v251
    %265 = vmatprep.subr.mxu0 0.0
    %266 = vmatpush1.msra.mxu0 %v252
    %267 = vmatprep.subr.mxu0 0.0
    %268 = vmatpush1.msra.mxu0 %v253
    %269 = vmatprep.subr.mxu0 0.0
    %270 = vmatpush1.msra.mxu0 0.0
    %271 = vmatprep.subr.mxu0 0.0
    %272 = vmatpush1.msra.mxu0 0.0
    %273 = vmatprep.subr.mxu0 0.0
    %274 = vmatpush1.msra.mxu0 0.0
    %275 = vmatprep.subr.mxu0 0.0
    %276 = vmatpush1.msra.mxu0 0.0
    %277 = vmatprep.subr.mxu0 0.0
    %278 = vmatpush1.msra.mxu0 0.0
    %279 = vmatprep.subr.mxu0 0.0
    %280 = vmatpush1.msra.mxu0 0.0
    %281 = vmatprep.subr.mxu0 0.0
    %282 = vmatpush1.msra.mxu0 0.0
    %283 = vmatprep.subr.mxu0 0.0
    %284 = vmatpush1.msra.mxu0 0.0
    %285 = vmatprep.subr.mxu0 0.0
    %286 = vmatpush1.msra.mxu0 0.0
    %287 = vmatprep.subr.mxu0 0.0
    %288 = vmatpush1.msra.mxu0 0.0
    %289 = vmatprep.subr.mxu0 0.0
    %290 = vmatpush1.msra.mxu0 0.0
    %291 = vmatprep.subr.mxu0 0.0
    %292 = vmatpush1.msra.mxu0 0.0
    %293 = vmatprep.subr.mxu0 0.0
    %294 = vmatpush1.msra.mxu0 0.0
    %295 = vmatprep.subr.mxu0 0.0
    %296 = vmatpush1.msra.mxu0 0.0
    %297 = vmatprep.subr.mxu0 0.0
    %298 = vmatpush1.msra.mxu0 0.0
    %299 = vmatprep.subr.mxu0 0.0
    %300 = vmatpush1.msra.mxu0 0.0
    %301 = vmatprep.subr.mxu0 0.0
    %302 = vmatpush1.msra.mxu0 0.0
    %303 = vmatprep.subr.mxu0 0.0
    %304 = vmatpush1.msra.mxu0 0.0
    %305 = vmatprep.subr.mxu0 0.0
    %306 = vmatpush1.msra.mxu0 0.0
    %307 = vmatprep.subr.mxu0 0.0
    %308 = vmatpush1.msra.mxu0 0.0
    %309 = vmatprep.subr.mxu0 0.0
    %310 = vmatpush1.msra.mxu0 0.0
    %311 = vmatprep.subr.mxu0 0.0
    %312 = vmatpush1.msra.mxu0 0.0
    %313 = vmatprep.subr.mxu0 0.0
    %314 = vmatpush1.msra.mxu0 0.0
    %315 = vmatprep.subr.mxu0 0.0
    %316 = vmatpush1.msra.mxu0 0.0
    %317 = vmatprep.subr.mxu0 0.0
    %318 = vmatpush1.msra.mxu0 0.0
    %319 = vmatprep.subr.mxu0 0.0
    %320 = vmatpush1.msra.mxu0 0.0
    %321 = vmatprep.subr.mxu0 0.0
    %322 = vmatpush1.msra.mxu0 0.0
    %323 = vmatprep.subr.mxu0 0.0
    %324 = vmatpush1.msra.mxu0 0.0
    %325 = vmatprep.mubr.f32.mxu0 0.0
    %326 = vmatmul.mubr.f32.gmra.mrb[0].mxu0 %v259
    %v327 = vpop.f32.mrb[0].mxu0
    %v328 = vadd.f32 0.0, %v327
    %v329 = vpop.f32.mrb[0].mxu0
    %330 = vdwg.mxu0
    %v331 = vadd.f32 %v256, %v328
    %v332 = vxor.u32 %v331, 2147483648
    %v333 = vmul.f32 %v332, 1.442695
    %v334 = vpow.pop %v333
    %v335 = vadd.f32 %v334, 1.0
    %v336 = vrcp.pop %v335
    %v337 = vmul.f32 1.0, %v336
    %v338 = vtanh.pop %v331
    %340 = vrot.lane.b32.xlu0 %v255, 32
    %v341 = vpop.permute.xlu0 %340
    %v343 = vmul.f32 %v337, %v341
    %345 = vrot.lane.b32.xlu0 %v338, 64
    %v346 = vpop.permute.xlu0 %345
    %v348 = vmul.f32 %v337, %v346
    %350 = vrot.lane.b32.xlu0 %v348, 32
    %v351 = vpop.permute.xlu0 %350
    %v353 = vadd.f32 %v343, %v351
    %v354 = vtanh.pop %v353
    %356 = vrot.lane.b32.xlu0 %v354, 64
    %v357 = vpop.permute.xlu0 %356
    %v359 = vmul.f32 %v337, %v357
    %v360 = vld [vmem:[#allocation2 + $0x8] sm:$0xff]
    %362 = vrot.lane.b32.xlu0 %v359, 32
    %v363 = vpop.permute.xlu0 %362
    %v364 = vsel %vm257, %v363, 0
    %366 = vmatprep.subr.mxu0 0.0
    %367 = vmatpush1.msra.mxu0 %v250
    %368 = vmatprep.subr.mxu0 0.0
    %369 = vmatpush1.msra.mxu0 %v251
    %370 = vmatprep.subr.mxu0 0.0
    %371 = vmatpush1.msra.mxu0 %v252
    %372 = vmatprep.subr.mxu0 0.0
    %373 = vmatpush1.msra.mxu0 %v253
    %374 = vmatprep.subr.mxu0 0.0
    %375 = vmatpush1.msra.mxu0 0.0
    %376 = vmatprep.subr.mxu0 0.0
    %377 = vmatpush1.msra.mxu0 0.0
    %378 = vmatprep.subr.mxu0 0.0
    %379 = vmatpush1.msra.mxu0 0.0
    %380 = vmatprep.subr.mxu0 0.0
    %381 = vmatpush1.msra.mxu0 0.0
    %382 = vmatprep.subr.mxu0 0.0
    %383 = vmatpush1.msra.mxu0 0.0
    %384 = vmatprep.subr.mxu0 0.0
    %385 = vmatpush1.msra.mxu0 0.0
    %386 = vmatprep.subr.mxu0 0.0
    %387 = vmatpush1.msra.mxu0 0.0
    %388 = vmatprep.subr.mxu0 0.0
    %389 = vmatpush1.msra.mxu0 0.0
    %390 = vmatprep.subr.mxu0 0.0
    %391 = vmatpush1.msra.mxu0 0.0
    %392 = vmatprep.subr.mxu0 0.0
    %393 = vmatpush1.msra.mxu0 0.0
    %394 = vmatprep.subr.mxu0 0.0
    %395 = vmatpush1.msra.mxu0 0.0
    %396 = vmatprep.subr.mxu0 0.0
    %397 = vmatpush1.msra.mxu0 0.0
    %398 = vmatprep.subr.mxu0 0.0
    %399 = vmatpush1.msra.mxu0 0.0
    %400 = vmatprep.subr.mxu0 0.0
    %401 = vmatpush1.msra.mxu0 0.0
    %402 = vmatprep.subr.mxu0 0.0
    %403 = vmatpush1.msra.mxu0 0.0
    %404 = vmatprep.subr.mxu0 0.0
    %405 = vmatpush1.msra.mxu0 0.0
    %406 = vmatprep.subr.mxu0 0.0
    %407 = vmatpush1.msra.mxu0 0.0
    %408 = vmatprep.subr.mxu0 0.0
    %409 = vmatpush1.msra.mxu0 0.0
    %410 = vmatprep.subr.mxu0 0.0
    %411 = vmatpush1.msra.mxu0 0.0
    %412 = vmatprep.subr.mxu0 0.0
    %413 = vmatpush1.msra.mxu0 0.0
    %414 = vmatprep.subr.mxu0 0.0
    %415 = vmatpush1.msra.mxu0 0.0
    %416 = vmatprep.subr.mxu0 0.0
    %417 = vmatpush1.msra.mxu0 0.0
    %418 = vmatprep.subr.mxu0 0.0
    %419 = vmatpush1.msra.mxu0 0.0
    %420 = vmatprep.subr.mxu0 0.0
    %421 = vmatpush1.msra.mxu0 0.0
    %422 = vmatprep.subr.mxu0 0.0
    %423 = vmatpush1.msra.mxu0 0.0
    %424 = vmatprep.subr.mxu0 0.0
    %425 = vmatpush1.msra.mxu0 0.0
    %426 = vmatprep.subr.mxu0 0.0
    %427 = vmatpush1.msra.mxu0 0.0
    %428 = vmatprep.subr.mxu0 0.0
    %429 = vmatpush1.msra.mxu0 0.0
    %430 = vmatprep.mubr.f32.mxu0 0.0
    %431 = vmatmul.mubr.f32.gmra.mrb[0].mxu0 %v364
    %v432 = vpop.f32.mrb[0].mxu0
    %v433 = vadd.f32 0.0, %v432
    %v434 = vpop.f32.mrb[0].mxu0
    %435 = vdwg.mxu0
    %v436 = vadd.f32 %v360, %v433
    %v437 = vxor.u32 %v436, 2147483648
    %v438 = vmul.f32 %v437, 1.442695
    %v439 = vpow.pop %v438
    %v440 = vadd.f32 %v439, 1.0
    %v441 = vrcp.pop %v440
    %v442 = vmul.f32 1.0, %v441
    %v443 = vtanh.pop %v436
    %v444 = vmul.f32 %v442, %v353
    %446 = vrot.lane.b32.xlu0 %v443, 64
    %v447 = vpop.permute.xlu0 %446
    %v449 = vmul.f32 %v442, %v447
    %451 = vrot.lane.b32.xlu0 %v449, 32
    %v452 = vpop.permute.xlu0 %451
    %v454 = vadd.f32 %v444, %v452
    %v455 = vtanh.pop %v454
    %457 = vrot.lane.b32.xlu0 %v455, 64
    %v458 = vpop.permute.xlu0 %457
    %v460 = vmul.f32 %v442, %v458
    %v461 = vld [vmem:[#allocation2 + $0x10] sm:$0xff]
    %463 = vrot.lane.b32.xlu0 %v460, 32
    %v464 = vpop.permute.xlu0 %463
    %v465 = vsel %vm257, %v464, 0
    %467 = vmatprep.subr.mxu0 0.0
    %468 = vmatpush1.msra.mxu0 %v250
    %469 = vmatprep.subr.mxu0 0.0
    %470 = vmatpush1.msra.mxu0 %v251
    %471 = vmatprep.subr.mxu0 0.0
    %472 = vmatpush1.msra.mxu0 %v252
    %473 = vmatprep.subr.mxu0 0.0
    %474 = vmatpush1.msra.mxu0 %v253
    %475 = vmatprep.subr.mxu0 0.0
    %476 = vmatpush1.msra.mxu0 0.0
    %477 = vmatprep.subr.mxu0 0.0
    %478 = vmatpush1.msra.mxu0 0.0
    %479 = vmatprep.subr.mxu0 0.0
    %480 = vmatpush1.msra.mxu0 0.0
    %481 = vmatprep.subr.mxu0 0.0
    %482 = vmatpush1.msra.mxu0 0.0
    %483 = vmatprep.subr.mxu0 0.0
    %484 = vmatpush1.msra.mxu0 0.0
    %485 = vmatprep.subr.mxu0 0.0
    %486 = vmatpush1.msra.mxu0 0.0
    %487 = vmatprep.subr.mxu0 0.0
    %488 = vmatpush1.msra.mxu0 0.0
    %489 = vmatprep.subr.mxu0 0.0
    %490 = vmatpush1.msra.mxu0 0.0
    %491 = vmatprep.subr.mxu0 0.0
    %492 = vmatpush1.msra.mxu0 0.0
    %493 = vmatprep.subr.mxu0 0.0
    %494 = vmatpush1.msra.mxu0 0.0
    %495 = vmatprep.subr.mxu0 0.0
    %496 = vmatpush1.msra.mxu0 0.0
    %497 = vmatprep.subr.mxu0 0.0
    %498 = vmatpush1.msra.mxu0 0.0
    %499 = vmatprep.subr.mxu0 0.0
    %500 = vmatpush1.msra.mxu0 0.0
    %501 = vmatprep.subr.mxu0 0.0
    %502 = vmatpush1.msra.mxu0 0.0
    %503 = vmatprep.subr.mxu0 0.0
    %504 = vmatpush1.msra.mxu0 0.0
    %505 = vmatprep.subr.mxu0 0.0
    %506 = vmatpush1.msra.mxu0 0.0
    %507 = vmatprep.subr.mxu0 0.0
    %508 = vmatpush1.msra.mxu0 0.0
    %509 = vmatprep.subr.mxu0 0.0
    %510 = vmatpush1.msra.mxu0 0.0
    %511 = vmatprep.subr.mxu0 0.0
    %512 = vmatpush1.msra.mxu0 0.0
    %513 = vmatprep.subr.mxu0 0.0
    %514 = vmatpush1.msra.mxu0 0.0
    %515 = vmatprep.subr.mxu0 0.0
    %516 = vmatpush1.msra.mxu0 0.0
    %517 = vmatprep.subr.mxu0 0.0
    %518 = vmatpush1.msra.mxu0 0.0
    %519 = vmatprep.subr.mxu0 0.0
    %520 = vmatpush1.msra.mxu0 0.0
    %521 = vmatprep.subr.mxu0 0.0
    %522 = vmatpush1.msra.mxu0 0.0
    %523 = vmatprep.subr.mxu0 0.0
    %524 = vmatpush1.msra.mxu0 0.0
    %525 = vmatprep.subr.mxu0 0.0
    %526 = vmatpush1.msra.mxu0 0.0
    %527 = vmatprep.subr.mxu0 0.0
    %528 = vmatpush1.msra.mxu0 0.0
    %529 = vmatprep.subr.mxu0 0.0
    %530 = vmatpush1.msra.mxu0 0.0
    %531 = vmatprep.mubr.f32.mxu0 0.0
    %532 = vmatmul.mubr.f32.gmra.mrb[0].mxu0 %v465
    %v533 = vpop.f32.mrb[0].mxu0
    %v534 = vadd.f32 0.0, %v533
    %v535 = vpop.f32.mrb[0].mxu0
    %536 = vdwg.mxu0
    %v537 = vadd.f32 %v461, %v534
    %v538 = vxor.u32 %v537, 2147483648
    %v539 = vmul.f32 %v538, 1.442695
    %v540 = vpow.pop %v539
    %v541 = vadd.f32 %v540, 1.0
    %v542 = vrcp.pop %v541
    %v543 = vmul.f32 1.0, %v542
    %v544 = vtanh.pop %v537
    %v545 = vmul.f32 %v543, %v454
    %547 = vrot.lane.b32.xlu0 %v544, 64
    %v548 = vpop.permute.xlu0 %547
    %v550 = vmul.f32 %v543, %v548
    %552 = vrot.lane.b32.xlu0 %v550, 32
    %v553 = vpop.permute.xlu0 %552
    %v555 = vadd.f32 %v545, %v553
    %v556 = vtanh.pop %v555
    %558 = vrot.lane.b32.xlu0 %v556, 64
    %v559 = vpop.permute.xlu0 %558
    %v561 = vmul.f32 %v543, %v559
    %v562 = vld [vmem:[#allocation2 + $0x18] sm:$0xff]
    %564 = vrot.lane.b32.xlu0 %v561, 32
    %v565 = vpop.permute.xlu0 %564
    %v566 = vsel %vm257, %v565, 0
    %568 = vmatprep.subr.mxu0 0.0
    %569 = vmatpush1.msra.mxu0 %v250
    %570 = vmatprep.subr.mxu0 0.0
    %571 = vmatpush1.msra.mxu0 %v251
    %572 = vmatprep.subr.mxu0 0.0
    %573 = vmatpush1.msra.mxu0 %v252
    %574 = vmatprep.subr.mxu0 0.0
    %575 = vmatpush1.msra.mxu0 %v253
    %576 = vmatprep.subr.mxu0 0.0
    %577 = vmatpush1.msra.mxu0 0.0
    %578 = vmatprep.subr.mxu0 0.0
    %579 = vmatpush1.msra.mxu0 0.0
    %580 = vmatprep.subr.mxu0 0.0
    %581 = vmatpush1.msra.mxu0 0.0
    %582 = vmatprep.subr.mxu0 0.0
    %583 = vmatpush1.msra.mxu0 0.0
    %584 = vmatprep.subr.mxu0 0.0
    %585 = vmatpush1.msra.mxu0 0.0
    %586 = vmatprep.subr.mxu0 0.0
    %587 = vmatpush1.msra.mxu0 0.0
    %588 = vmatprep.subr.mxu0 0.0
    %589 = vmatpush1.msra.mxu0 0.0
    %590 = vmatprep.subr.mxu0 0.0
    %591 = vmatpush1.msra.mxu0 0.0
    %592 = vmatprep.subr.mxu0 0.0
    %593 = vmatpush1.msra.mxu0 0.0
    %594 = vmatprep.subr.mxu0 0.0
    %595 = vmatpush1.msra.mxu0 0.0
    %596 = vmatprep.subr.mxu0 0.0
    %597 = vmatpush1.msra.mxu0 0.0
    %598 = vmatprep.subr.mxu0 0.0
    %599 = vmatpush1.msra.mxu0 0.0
    %600 = vmatprep.subr.mxu0 0.0
    %601 = vmatpush1.msra.mxu0 0.0
    %602 = vmatprep.subr.mxu0 0.0
    %603 = vmatpush1.msra.mxu0 0.0
    %604 = vmatprep.subr.mxu0 0.0
    %605 = vmatpush1.msra.mxu0 0.0
    %606 = vmatprep.subr.mxu0 0.0
    %607 = vmatpush1.msra.mxu0 0.0
    %608 = vmatprep.subr.mxu0 0.0
    %609 = vmatpush1.msra.mxu0 0.0
    %610 = vmatprep.subr.mxu0 0.0
    %611 = vmatpush1.msra.mxu0 0.0
    %612 = vmatprep.subr.mxu0 0.0
    %613 = vmatpush1.msra.mxu0 0.0
    %614 = vmatprep.subr.mxu0 0.0
    %615 = vmatpush1.msra.mxu0 0.0
    %616 = vmatprep.subr.mxu0 0.0
    %617 = vmatpush1.msra.mxu0 0.0
    %618 = vmatprep.subr.mxu0 0.0
    %619 = vmatpush1.msra.mxu0 0.0
    %620 = vmatprep.subr.mxu0 0.0
    %621 = vmatpush1.msra.mxu0 0.0
    %622 = vmatprep.subr.mxu0 0.0
    %623 = vmatpush1.msra.mxu0 0.0
    %624 = vmatprep.subr.mxu0 0.0
    %625 = vmatpush1.msra.mxu0 0.0
    %626 = vmatprep.subr.mxu0 0.0
    %627 = vmatpush1.msra.mxu0 0.0
    %628 = vmatprep.subr.mxu0 0.0
    %629 = vmatpush1.msra.mxu0 0.0
    %630 = vmatprep.subr.mxu0 0.0
    %631 = vmatpush1.msra.mxu0 0.0
    %632 = vmatprep.mubr.f32.mxu0 0.0
    %633 = vmatmul.mubr.f32.gmra.mrb[0].mxu0 %v566
    %v634 = vpop.f32.mrb[0].mxu0
    %v635 = vadd.f32 0.0, %v634
    %v636 = vpop.f32.mrb[0].mxu0
    %637 = vdwg.mxu0
    %v638 = vadd.f32 %v562, %v635
    %v639 = vxor.u32 %v638, 2147483648
    %v640 = vmul.f32 %v639, 1.442695
    %v641 = vpow.pop %v640
    %v642 = vadd.f32 %v641, 1.0
    %v643 = vrcp.pop %v642
    %v644 = vmul.f32 1.0, %v643
    %v645 = vtanh.pop %v638
    %v646 = vmul.f32 %v644, %v555
    %648 = vrot.lane.b32.xlu0 %v645, 64
    %v649 = vpop.permute.xlu0 %648
    %v651 = vmul.f32 %v644, %v649
    %653 = vrot.lane.b32.xlu0 %v651, 32
    %v654 = vpop.permute.xlu0 %653
    %v656 = vadd.f32 %v646, %v654
    %v657 = vtanh.pop %v656
    %659 = vrot.lane.b32.xlu0 %v657, 64
    %v660 = vpop.permute.xlu0 %659
    %v662 = vmul.f32 %v644, %v660
    %v663 = vld [vmem:[#allocation2 + $0x20] sm:$0xff]
    %665 = vrot.lane.b32.xlu0 %v662, 32
    %v666 = vpop.permute.xlu0 %665
    %v667 = vsel %vm257, %v666, 0
    %669 = vmatprep.subr.mxu0 0.0
    %670 = vmatpush1.msra.mxu0 %v250
    %671 = vmatprep.subr.mxu0 0.0
    %672 = vmatpush1.msra.mxu0 %v251
    %673 = vmatprep.subr.mxu0 0.0
    %674 = vmatpush1.msra.mxu0 %v252
    %675 = vmatprep.subr.mxu0 0.0
    %676 = vmatpush1.msra.mxu0 %v253
    %677 = vmatprep.subr.mxu0 0.0
    %678 = vmatpush1.msra.mxu0 0.0
    %679 = vmatprep.subr.mxu0 0.0
    %680 = vmatpush1.msra.mxu0 0.0
    %681 = vmatprep.subr.mxu0 0.0
    %682 = vmatpush1.msra.mxu0 0.0
    %683 = vmatprep.subr.mxu0 0.0
    %684 = vmatpush1.msra.mxu0 0.0
    %685 = vmatprep.subr.mxu0 0.0
    %686 = vmatpush1.msra.mxu0 0.0
    %687 = vmatprep.subr.mxu0 0.0
    %688 = vmatpush1.msra.mxu0 0.0
    %689 = vmatprep.subr.mxu0 0.0
    %690 = vmatpush1.msra.mxu0 0.0
    %691 = vmatprep.subr.mxu0 0.0
    %692 = vmatpush1.msra.mxu0 0.0
    %693 = vmatprep.subr.mxu0 0.0
    %694 = vmatpush1.msra.mxu0 0.0
    %695 = vmatprep.subr.mxu0 0.0
    %696 = vmatpush1.msra.mxu0 0.0
    %697 = vmatprep.subr.mxu0 0.0
    %698 = vmatpush1.msra.mxu0 0.0
    %699 = vmatprep.subr.mxu0 0.0
    %700 = vmatpush1.msra.mxu0 0.0
    %701 = vmatprep.subr.mxu0 0.0
    %702 = vmatpush1.msra.mxu0 0.0
    %703 = vmatprep.subr.mxu0 0.0
    %704 = vmatpush1.msra.mxu0 0.0
    %705 = vmatprep.subr.mxu0 0.0
    %706 = vmatpush1.msra.mxu0 0.0
    %707 = vmatprep.subr.mxu0 0.0
    %708 = vmatpush1.msra.mxu0 0.0
    %709 = vmatprep.subr.mxu0 0.0
    %710 = vmatpush1.msra.mxu0 0.0
    %711 = vmatprep.subr.mxu0 0.0
    %712 = vmatpush1.msra.mxu0 0.0
    %713 = vmatprep.subr.mxu0 0.0
    %714 = vmatpush1.msra.mxu0 0.0
    %715 = vmatprep.subr.mxu0 0.0
    %716 = vmatpush1.msra.mxu0 0.0
    %717 = vmatprep.subr.mxu0 0.0
    %718 = vmatpush1.msra.mxu0 0.0
    %719 = vmatprep.subr.mxu0 0.0
    %720 = vmatpush1.msra.mxu0 0.0
    %721 = vmatprep.subr.mxu0 0.0
    %722 = vmatpush1.msra.mxu0 0.0
    %723 = vmatprep.subr.mxu0 0.0
    %724 = vmatpush1.msra.mxu0 0.0
    %725 = vmatprep.subr.mxu0 0.0
    %726 = vmatpush1.msra.mxu0 0.0
    %727 = vmatprep.subr.mxu0 0.0
    %728 = vmatpush1.msra.mxu0 0.0
    %729 = vmatprep.subr.mxu0 0.0
    %730 = vmatpush1.msra.mxu0 0.0
    %731 = vmatprep.subr.mxu0 0.0
    %732 = vmatpush1.msra.mxu0 0.0
    %733 = vmatprep.mubr.f32.mxu0 0.0
    %734 = vmatmul.mubr.f32.gmra.mrb[0].mxu0 %v667
    %v735 = vpop.f32.mrb[0].mxu0
    %v736 = vadd.f32 0.0, %v735
    %v737 = vpop.f32.mrb[0].mxu0
    %738 = vdwg.mxu0
    %v739 = vadd.f32 %v663, %v736
    %v740 = vxor.u32 %v739, 2147483648
    %v741 = vmul.f32 %v740, 1.442695
    %v742 = vpow.pop %v741
    %v743 = vadd.f32 %v742, 1.0
    %v744 = vrcp.pop %v743
    %v745 = vmul.f32 1.0, %v744
    %v746 = vtanh.pop %v739
    %v747 = vmul.f32 %v745, %v656
    %749 = vrot.lane.b32.xlu0 %v746, 64
    %v750 = vpop.permute.xlu0 %749
    %v752 = vmul.f32 %v745, %v750
    %754 = vrot.lane.b32.xlu0 %v752, 32
    %v755 = vpop.permute.xlu0 %754
    %v757 = vadd.f32 %v747, %v755
    %v758 = vtanh.pop %v757
    %760 = vrot.lane.b32.xlu0 %v758, 64
    %v761 = vpop.permute.xlu0 %760
    %v763 = vmul.f32 %v745, %v761
    %v764 = vld [vmem:[#allocation2 + $0x28] sm:$0xff]
    %766 = vrot.lane.b32.xlu0 %v763, 32
    %v767 = vpop.permute.xlu0 %766
    %v768 = vsel %vm257, %v767, 0
    %770 = vmatprep.subr.mxu0 0.0
    %771 = vmatpush1.msra.mxu0 %v250
    %772 = vmatprep.subr.mxu0 0.0
    %773 = vmatpush1.msra.mxu0 %v251
    %774 = vmatprep.subr.mxu0 0.0
    %775 = vmatpush1.msra.mxu0 %v252
    %776 = vmatprep.subr.mxu0 0.0
    %777 = vmatpush1.msra.mxu0 %v253
    %778 = vmatprep.subr.mxu0 0.0
    %779 = vmatpush1.msra.mxu0 0.0
    %780 = vmatprep.subr.mxu0 0.0
    %781 = vmatpush1.msra.mxu0 0.0
    %782 = vmatprep.subr.mxu0 0.0
    %783 = vmatpush1.msra.mxu0 0.0
    %784 = vmatprep.subr.mxu0 0.0
    %785 = vmatpush1.msra.mxu0 0.0
    %786 = vmatprep.subr.mxu0 0.0
    %787 = vmatpush1.msra.mxu0 0.0
    %788 = vmatprep.subr.mxu0 0.0
    %789 = vmatpush1.msra.mxu0 0.0
    %790 = vmatprep.subr.mxu0 0.0
    %791 = vmatpush1.msra.mxu0 0.0
    %792 = vmatprep.subr.mxu0 0.0
    %793 = vmatpush1.msra.mxu0 0.0
    %794 = vmatprep.subr.mxu0 0.0
    %795 = vmatpush1.msra.mxu0 0.0
    %796 = vmatprep.subr.mxu0 0.0
    %797 = vmatpush1.msra.mxu0 0.0
    %798 = vmatprep.subr.mxu0 0.0
    %799 = vmatpush1.msra.mxu0 0.0
    %800 = vmatprep.subr.mxu0 0.0
    %801 = vmatpush1.msra.mxu0 0.0
    %802 = vmatprep.subr.mxu0 0.0
    %803 = vmatpush1.msra.mxu0 0.0
    %804 = vmatprep.subr.mxu0 0.0
    %805 = vmatpush1.msra.mxu0 0.0
    %806 = vmatprep.subr.mxu0 0.0
    %807 = vmatpush1.msra.mxu0 0.0
    %808 = vmatprep.subr.mxu0 0.0
    %809 = vmatpush1.msra.mxu0 0.0
    %810 = vmatprep.subr.mxu0 0.0
    %811 = vmatpush1.msra.mxu0 0.0
    %812 = vmatprep.subr.mxu0 0.0
    %813 = vmatpush1.msra.mxu0 0.0
    %814 = vmatprep.subr.mxu0 0.0
    %815 = vmatpush1.msra.mxu0 0.0
    %816 = vmatprep.subr.mxu0 0.0
    %817 = vmatpush1.msra.mxu0 0.0
    %818 = vmatprep.subr.mxu0 0.0
    %819 = vmatpush1.msra.mxu0 0.0
    %820 = vmatprep.subr.mxu0 0.0
    %821 = vmatpush1.msra.mxu0 0.0
    %822 = vmatprep.subr.mxu0 0.0
    %823 = vmatpush1.msra.mxu0 0.0
    %824 = vmatprep.subr.mxu0 0.0
    %825 = vmatpush1.msra.mxu0 0.0
    %826 = vmatprep.subr.mxu0 0.0
    %827 = vmatpush1.msra.mxu0 0.0
    %828 = vmatprep.subr.mxu0 0.0
    %829 = vmatpush1.msra.mxu0 0.0
    %830 = vmatprep.subr.mxu0 0.0
    %831 = vmatpush1.msra.mxu0 0.0
    %832 = vmatprep.subr.mxu0 0.0
    %833 = vmatpush1.msra.mxu0 0.0
    %834 = vmatprep.mubr.f32.mxu0 0.0
    %835 = vmatmul.mubr.f32.gmra.mrb[0].mxu0 %v768
    %v836 = vpop.f32.mrb[0].mxu0
    %v837 = vadd.f32 0.0, %v836
    %v838 = vpop.f32.mrb[0].mxu0
    %839 = vdwg.mxu0
    %v840 = vadd.f32 %v764, %v837
    %v841 = vxor.u32 %v840, 2147483648
    %v842 = vmul.f32 %v841, 1.442695
    %v843 = vpow.pop %v842
    %v844 = vadd.f32 %v843, 1.0
    %v845 = vrcp.pop %v844
    %v846 = vmul.f32 1.0, %v845
    %v847 = vtanh.pop %v840
    %v848 = vmul.f32 %v846, %v757
    %850 = vrot.lane.b32.xlu0 %v847, 64
    %v851 = vpop.permute.xlu0 %850
    %v853 = vmul.f32 %v846, %v851
    %855 = vrot.lane.b32.xlu0 %v853, 32
    %v856 = vpop.permute.xlu0 %855
    %v858 = vadd.f32 %v848, %v856
    %v859 = vtanh.pop %v858
    %861 = vrot.lane.b32.xlu0 %v859, 64
    %v862 = vpop.permute.xlu0 %861
    %v864 = vmul.f32 %v846, %v862
    %v865 = vld [vmem:[#allocation2 + $0x30] sm:$0xff]
    %867 = vrot.lane.b32.xlu0 %v864, 32
    %v868 = vpop.permute.xlu0 %867
    %v869 = vsel %vm257, %v868, 0
    %871 = vmatprep.subr.mxu0 0.0
    %872 = vmatpush1.msra.mxu0 %v250
    %873 = vmatprep.subr.mxu0 0.0
    %874 = vmatpush1.msra.mxu0 %v251
    %875 = vmatprep.subr.mxu0 0.0
    %876 = vmatpush1.msra.mxu0 %v252
    %877 = vmatprep.subr.mxu0 0.0
    %878 = vmatpush1.msra.mxu0 %v253
    %879 = vmatprep.subr.mxu0 0.0
    %880 = vmatpush1.msra.mxu0 0.0
    %881 = vmatprep.subr.mxu0 0.0
    %882 = vmatpush1.msra.mxu0 0.0
    %883 = vmatprep.subr.mxu0 0.0
    %884 = vmatpush1.msra.mxu0 0.0
    %885 = vmatprep.subr.mxu0 0.0
    %886 = vmatpush1.msra.mxu0 0.0
    %887 = vmatprep.subr.mxu0 0.0
    %888 = vmatpush1.msra.mxu0 0.0
    %889 = vmatprep.subr.mxu0 0.0
    %890 = vmatpush1.msra.mxu0 0.0
    %891 = vmatprep.subr.mxu0 0.0
    %892 = vmatpush1.msra.mxu0 0.0
    %893 = vmatprep.subr.mxu0 0.0
    %894 = vmatpush1.msra.mxu0 0.0
    %895 = vmatprep.subr.mxu0 0.0
    %896 = vmatpush1.msra.mxu0 0.0
    %897 = vmatprep.subr.mxu0 0.0
    %898 = vmatpush1.msra.mxu0 0.0
    %899 = vmatprep.subr.mxu0 0.0
    %900 = vmatpush1.msra.mxu0 0.0
    %901 = vmatprep.subr.mxu0 0.0
    %902 = vmatpush1.msra.mxu0 0.0
    %903 = vmatprep.subr.mxu0 0.0
    %904 = vmatpush1.msra.mxu0 0.0
    %905 = vmatprep.subr.mxu0 0.0
    %906 = vmatpush1.msra.mxu0 0.0
    %907 = vmatprep.subr.mxu0 0.0
    %908 = vmatpush1.msra.mxu0 0.0
    %909 = vmatprep.subr.mxu0 0.0
    %910 = vmatpush1.msra.mxu0 0.0
    %911 = vmatprep.subr.mxu0 0.0
    %912 = vmatpush1.msra.mxu0 0.0
    %913 = vmatprep.subr.mxu0 0.0
    %914 = vmatpush1.msra.mxu0 0.0
    %915 = vmatprep.subr.mxu0 0.0
    %916 = vmatpush1.msra.mxu0 0.0
    %917 = vmatprep.subr.mxu0 0.0
    %918 = vmatpush1.msra.mxu0 0.0
    %919 = vmatprep.subr.mxu0 0.0
    %920 = vmatpush1.msra.mxu0 0.0
    %921 = vmatprep.subr.mxu0 0.0
    %922 = vmatpush1.msra.mxu0 0.0
    %923 = vmatprep.subr.mxu0 0.0
    %924 = vmatpush1.msra.mxu0 0.0
    %925 = vmatprep.subr.mxu0 0.0
    %926 = vmatpush1.msra.mxu0 0.0
    %927 = vmatprep.subr.mxu0 0.0
    %928 = vmatpush1.msra.mxu0 0.0
    %929 = vmatprep.subr.mxu0 0.0
    %930 = vmatpush1.msra.mxu0 0.0
    %931 = vmatprep.subr.mxu0 0.0
    %932 = vmatpush1.msra.mxu0 0.0
    %933 = vmatprep.subr.mxu0 0.0
    %934 = vmatpush1.msra.mxu0 0.0
    %935 = vmatprep.mubr.f32.mxu0 0.0
    %936 = vmatmul.mubr.f32.gmra.mrb[0].mxu0 %v869
    %v937 = vpop.f32.mrb[0].mxu0
    %v938 = vadd.f32 0.0, %v937
    %v939 = vpop.f32.mrb[0].mxu0
    %940 = vdwg.mxu0
    %v941 = vadd.f32 %v865, %v938
    %v942 = vxor.u32 %v941, 2147483648
    %v943 = vmul.f32 %v942, 1.442695
    %v944 = vpow.pop %v943
    %v945 = vadd.f32 %v944, 1.0
    %v946 = vrcp.pop %v945
    %v947 = vmul.f32 1.0, %v946
    %v948 = vtanh.pop %v941
    %v949 = vmul.f32 %v947, %v858
    %951 = vrot.lane.b32.xlu0 %v948, 64
    %v952 = vpop.permute.xlu0 %951
    %v954 = vmul.f32 %v947, %v952
    %956 = vrot.lane.b32.xlu0 %v954, 32
    %v957 = vpop.permute.xlu0 %956
    %v959 = vadd.f32 %v949, %v957
    %v960 = vtanh.pop %v959
    %962 = vrot.lane.b32.xlu0 %v960, 64
    %v963 = vpop.permute.xlu0 %962
    %v965 = vmul.f32 %v947, %v963
    %v966 = vld [vmem:[#allocation2 + $0x38] sm:$0xff]
    %968 = vrot.lane.b32.xlu0 %v965, 32
    %v969 = vpop.permute.xlu0 %968
    %v970 = vsel %vm257, %v969, 0
    %972 = vmatprep.subr.mxu0 0.0
    %973 = vmatpush1.msra.mxu0 %v250
    %974 = vmatprep.subr.mxu0 0.0
    %975 = vmatpush1.msra.mxu0 %v251
    %976 = vmatprep.subr.mxu0 0.0
    %977 = vmatpush1.msra.mxu0 %v252
    %978 = vmatprep.subr.mxu0 0.0
    %979 = vmatpush1.msra.mxu0 %v253
    %980 = vmatprep.subr.mxu0 0.0
    %981 = vmatpush1.msra.mxu0 0.0
    %982 = vmatprep.subr.mxu0 0.0
    %983 = vmatpush1.msra.mxu0 0.0
    %984 = vmatprep.subr.mxu0 0.0
    %985 = vmatpush1.msra.mxu0 0.0
    %986 = vmatprep.subr.mxu0 0.0
    %987 = vmatpush1.msra.mxu0 0.0
    %988 = vmatprep.subr.mxu0 0.0
    %989 = vmatpush1.msra.mxu0 0.0
    %990 = vmatprep.subr.mxu0 0.0
    %991 = vmatpush1.msra.mxu0 0.0
    %992 = vmatprep.subr.mxu0 0.0
    %993 = vmatpush1.msra.mxu0 0.0
    %994 = vmatprep.subr.mxu0 0.0
    %995 = vmatpush1.msra.mxu0 0.0
    %996 = vmatprep.subr.mxu0 0.0
    %997 = vmatpush1.msra.mxu0 0.0
    %998 = vmatprep.subr.mxu0 0.0
    %999 = vmatpush1.msra.mxu0 0.0
    %1000 = vmatprep.subr.mxu0 0.0
    %1001 = vmatpush1.msra.mxu0 0.0
    %1002 = vmatprep.subr.mxu0 0.0
    %1003 = vmatpush1.msra.mxu0 0.0
    %1004 = vmatprep.subr.mxu0 0.0
    %1005 = vmatpush1.msra.mxu0 0.0
    %1006 = vmatprep.subr.mxu0 0.0
    %1007 = vmatpush1.msra.mxu0 0.0
    %1008 = vmatprep.subr.mxu0 0.0
    %1009 = vmatpush1.msra.mxu0 0.0
    %1010 = vmatprep.subr.mxu0 0.0
    %1011 = vmatpush1.msra.mxu0 0.0
    %1012 = vmatprep.subr.mxu0 0.0
    %1013 = vmatpush1.msra.mxu0 0.0
    %1014 = vmatprep.subr.mxu0 0.0
    %1015 = vmatpush1.msra.mxu0 0.0
    %1016 = vmatprep.subr.mxu0 0.0
    %1017 = vmatpush1.msra.mxu0 0.0
    %1018 = vmatprep.subr.mxu0 0.0
    %1019 = vmatpush1.msra.mxu0 0.0
    %1020 = vmatprep.subr.mxu0 0.0
    %1021 = vmatpush1.msra.mxu0 0.0
    %1022 = vmatprep.subr.mxu0 0.0
    %1023 = vmatpush1.msra.mxu0 0.0
    %1024 = vmatprep.subr.mxu0 0.0
    %1025 = vmatpush1.msra.mxu0 0.0
    %1026 = vmatprep.subr.mxu0 0.0
    %1027 = vmatpush1.msra.mxu0 0.0
    %1028 = vmatprep.subr.mxu0 0.0
    %1029 = vmatpush1.msra.mxu0 0.0
    %1030 = vmatprep.subr.mxu0 0.0
    %1031 = vmatpush1.msra.mxu0 0.0
    %1032 = vmatprep.subr.mxu0 0.0
    %1033 = vmatpush1.msra.mxu0 0.0
    %1034 = vmatprep.subr.mxu0 0.0
    %1035 = vmatpush1.msra.mxu0 0.0
    %1036 = vmatprep.mubr.f32.mxu0 0.0
    %1037 = vmatmul.mubr.f32.gmra.mrb[0].mxu0 %v970
    %v1038 = vpop.f32.mrb[0].mxu0
    %v1039 = vadd.f32 0.0, %v1038
    %v1040 = vpop.f32.mrb[0].mxu0
    %1041 = vdwg.mxu0
    %v1042 = vadd.f32 %v966, %v1039
    %v1043 = vxor.u32 %v1042, 2147483648
    %v1044 = vmul.f32 %v1043, 1.442695
    %v1045 = vpow.pop %v1044
    %v1046 = vadd.f32 %v1045, 1.0
    %v1047 = vrcp.pop %v1046
    %v1048 = vmul.f32 1.0, %v1047
    %v1049 = vtanh.pop %v1042
    %v1050 = vmul.f32 %v1048, %v959
    %1052 = vrot.lane.b32.xlu0 %v1049, 64
    %v1053 = vpop.permute.xlu0 %1052
    %v1055 = vmul.f32 %v1048, %v1053
    %1057 = vrot.lane.b32.xlu0 %v1055, 32
    %v1058 = vpop.permute.xlu0 %1057
    %v1060 = vadd.f32 %v1050, %v1058
    %v1061 = vtanh.pop %v1060
    %1063 = vrot.lane.b32.xlu0 %v1061, 64
    %v1064 = vpop.permute.xlu0 %1063
    %v1066 = vmul.f32 %v1048, %v1064
    %1068 = vrot.lane.b32.xlu0 %v1066, 32
    %v1069 = vpop.permute.xlu0 %1068
    %1071 = vst.msk [vmem:[#allocation13] sm:$0xff] %vm257, %v1069
    %1073 = vrot.lane.b32.xlu0 %v1060, 96
    %v1074 = vpop.permute.xlu0 %1073
    %1076 = vst.msk [vmem:[#allocation15] sm:$0xff] %vm257, %v1074
    %v1077 = vld [vmem:[%s7] sm:$0xff]
    %v1078 = vld [vmem:[%s7 + $0x8] sm:$0xff]
    %v1079 = vld [vmem:[%s7 + $0x10] sm:$0xff]
    %v1080 = vld [vmem:[%s7 + $0x18] sm:$0xff]
    %v1081 = vld [vmem:[%s7 + $0x20] sm:$0xff]
    %v1082 = vld [vmem:[%s7 + $0x28] sm:$0xff]
    %v1083 = vld [vmem:[%s7 + $0x30] sm:$0xff]
    %v1084 = vld [vmem:[%s7 + $0x38] sm:$0xff]
    %v1085 = vld [vmem:[%s8] sm:$0x3]
    %v1087 = vlaneseq
    %v1088 = vshrl.u32 %v1087, 7
    %v1089 = vsub.s32 0, %v1088
    %v1090 = vrot.slane %v1085, %v1089
    %v1091 = vlaneseq
    %v1092 = vshrl.u32 %v1091, 7
    %v1093 = vsub.s32 1, %v1092
    %v1094 = vrot.slane %v1085, %v1093
    %v1097 = vsel %vm257, %v1069, 0
    %1099 = vmatprep.subr.mxu0 %v1078
    %1100 = vmatpush1.msra.mxu0 %v1077
    %1101 = vmatprep.subr.mxu0 %v1080
    %1102 = vmatpush1.msra.mxu0 %v1079
    %1103 = vmatprep.subr.mxu0 %v1082
    %1104 = vmatpush1.msra.mxu0 %v1081
    %1105 = vmatprep.subr.mxu0 %v1084
    %1106 = vmatpush1.msra.mxu0 %v1083
    %1107 = vmatprep.subr.mxu0 0.0
    %1108 = vmatpush1.msra.mxu0 0.0
    %1109 = vmatprep.subr.mxu0 0.0
    %1110 = vmatpush1.msra.mxu0 0.0
    %1111 = vmatprep.subr.mxu0 0.0
    %1112 = vmatpush1.msra.mxu0 0.0
    %1113 = vmatprep.subr.mxu0 0.0
    %1114 = vmatpush1.msra.mxu0 0.0
    %1115 = vmatprep.subr.mxu0 0.0
    %1116 = vmatpush1.msra.mxu0 0.0
    %1117 = vmatprep.subr.mxu0 0.0
    %1118 = vmatpush1.msra.mxu0 0.0
    %1119 = vmatprep.subr.mxu0 0.0
    %1120 = vmatpush1.msra.mxu0 0.0
    %1121 = vmatprep.subr.mxu0 0.0
    %1122 = vmatpush1.msra.mxu0 0.0
    %1123 = vmatprep.subr.mxu0 0.0
    %1124 = vmatpush1.msra.mxu0 0.0
    %1125 = vmatprep.subr.mxu0 0.0
    %1126 = vmatpush1.msra.mxu0 0.0
    %1127 = vmatprep.subr.mxu0 0.0
    %1128 = vmatpush1.msra.mxu0 0.0
    %1129 = vmatprep.subr.mxu0 0.0
    %1130 = vmatpush1.msra.mxu0 0.0
    %1131 = vmatprep.subr.mxu0 0.0
    %1132 = vmatpush1.msra.mxu0 0.0
    %1133 = vmatprep.subr.mxu0 0.0
    %1134 = vmatpush1.msra.mxu0 0.0
    %1135 = vmatprep.subr.mxu0 0.0
    %1136 = vmatpush1.msra.mxu0 0.0
    %1137 = vmatprep.subr.mxu0 0.0
    %1138 = vmatpush1.msra.mxu0 0.0
    %1139 = vmatprep.subr.mxu0 0.0
    %1140 = vmatpush1.msra.mxu0 0.0
    %1141 = vmatprep.subr.mxu0 0.0
    %1142 = vmatpush1.msra.mxu0 0.0
    %1143 = vmatprep.subr.mxu0 0.0
    %1144 = vmatpush1.msra.mxu0 0.0
    %1145 = vmatprep.subr.mxu0 0.0
    %1146 = vmatpush1.msra.mxu0 0.0
    %1147 = vmatprep.subr.mxu0 0.0
    %1148 = vmatpush1.msra.mxu0 0.0
    %1149 = vmatprep.subr.mxu0 0.0
    %1150 = vmatpush1.msra.mxu0 0.0
    %1151 = vmatprep.subr.mxu0 0.0
    %1152 = vmatpush1.msra.mxu0 0.0
    %1153 = vmatprep.subr.mxu0 0.0
    %1154 = vmatpush1.msra.mxu0 0.0
    %1155 = vmatprep.subr.mxu0 0.0
    %1156 = vmatpush1.msra.mxu0 0.0
    %1157 = vmatprep.subr.mxu0 0.0
    %1158 = vmatpush1.msra.mxu0 0.0
    %1159 = vmatprep.subr.mxu0 0.0
    %1160 = vmatpush1.msra.mxu0 0.0
    %1161 = vmatprep.subr.mxu0 0.0
    %1162 = vmatpush1.msra.mxu0 0.0
    %1163 = vmatprep.mubr.f32.mxu0 0.0
    %1164 = vmatmul.mubr.f32.gmra.mrb[0].mxu0 %v1097
    %v1165 = vpop.f32.mrb[0].mxu0
    %v1166 = vadd.f32 %v1090, %v1165
    %v1167 = vpop.f32.mrb[0].mxu0
    %v1168 = vadd.f32 %v1094, %v1167
    %1169 = vdwg.mxu0
    %v1170 = vmax.f32 %v1166, 0.0
    %v1171 = vmax.f32 %v1168, 0.0
    %v1172 = vld [vmem:[#allocation10] sm:$0xff]
    %v1173 = vld [vmem:[#allocation10 + $0x8] sm:$0xff]
    %v1174 = vld [vmem:[#allocation10 + $0x10] sm:$0xff]
    %v1175 = vld [vmem:[#allocation10 + $0x18] sm:$0xff]
    %v1176 = vld [vmem:[#allocation10 + $0x20] sm:$0xff]
    %v1177 = vld [vmem:[#allocation10 + $0x28] sm:$0xff]
    %v1178 = vld [vmem:[#allocation10 + $0x30] sm:$0xff]
    %v1179 = vld [vmem:[#allocation10 + $0x38] sm:$0xff]
    %v1180 = vld [vmem:[#allocation10 + $0x40] sm:$0xff]
    %v1181 = vld [vmem:[#allocation10 + $0x48] sm:$0xff]
    %v1182 = vld [vmem:[#allocation10 + $0x50] sm:$0xff]
    %v1183 = vld [vmem:[#allocation10 + $0x58] sm:$0xff]
    %v1184 = vld [vmem:[#allocation10 + $0x60] sm:$0xff]
    %v1185 = vld [vmem:[#allocation10 + $0x68] sm:$0xff]
    %v1186 = vld [vmem:[#allocation10 + $0x70] sm:$0xff]
    %v1187 = vld [vmem:[#allocation10 + $0x78] sm:$0xff]
    %v1188 = vld [vmem:[#allocation10 + $0x80] sm:$0xff]
    %v1189 = vld [vmem:[#allocation10 + $0x88] sm:$0xff]
    %v1190 = vld [vmem:[#allocation10 + $0x90] sm:$0xff]
    %v1191 = vld [vmem:[#allocation10 + $0x98] sm:$0xff]
    %v1192 = vld [vmem:[#allocation10 + $0xa0] sm:$0xff]
    %v1193 = vld [vmem:[#allocation10 + $0xa8] sm:$0xff]
    %v1194 = vld [vmem:[#allocation10 + $0xb0] sm:$0xff]
    %v1195 = vld [vmem:[#allocation10 + $0xb8] sm:$0xff]
    %v1196 = vld [vmem:[#allocation10 + $0xc0] sm:$0xff]
    %v1197 = vld [vmem:[#allocation10 + $0xc8] sm:$0xff]
    %v1198 = vld [vmem:[#allocation10 + $0xd0] sm:$0xff]
    %v1199 = vld [vmem:[#allocation10 + $0xd8] sm:$0xff]
    %v1200 = vld [vmem:[#allocation10 + $0xe0] sm:$0xff]
    %v1201 = vld [vmem:[#allocation10 + $0xe8] sm:$0xff]
    %v1202 = vld [vmem:[#allocation10 + $0xf0] sm:$0xff]
    %v1203 = vld [vmem:[#allocation10 + $0xf8] sm:$0xff]
    %v1204 = vld [vmem:[%s10] sm:$0x1]
    %v1206 = vlaneseq
    %v1207 = vshrl.u32 %v1206, 7
    %v1208 = vsub.s32 0, %v1207
    %v1209 = vrot.slane %v1204, %v1208
    %1211 = vmatprep.subr.mxu0 0.0
    %1212 = vmatpush1.msra.mxu0 %v1172
    %1213 = vmatprep.subr.mxu0 0.0
    %1214 = vmatpush1.msra.mxu0 %v1173
    %1215 = vmatprep.subr.mxu0 0.0
    %1216 = vmatpush1.msra.mxu0 %v1174
    %1217 = vmatprep.subr.mxu0 0.0
    %1218 = vmatpush1.msra.mxu0 %v1175
    %1219 = vmatprep.subr.mxu0 0.0
    %1220 = vmatpush1.msra.mxu0 %v1176
    %1221 = vmatprep.subr.mxu0 0.0
    %1222 = vmatpush1.msra.mxu0 %v1177
    %1223 = vmatprep.subr.mxu0 0.0
    %1224 = vmatpush1.msra.mxu0 %v1178
    %1225 = vmatprep.subr.mxu0 0.0
    %1226 = vmatpush1.msra.mxu0 %v1179
    %1227 = vmatprep.subr.mxu0 0.0
    %1228 = vmatpush1.msra.mxu0 %v1180
    %1229 = vmatprep.subr.mxu0 0.0
    %1230 = vmatpush1.msra.mxu0 %v1181
    %1231 = vmatprep.subr.mxu0 0.0
    %1232 = vmatpush1.msra.mxu0 %v1182
    %1233 = vmatprep.subr.mxu0 0.0
    %1234 = vmatpush1.msra.mxu0 %v1183
    %1235 = vmatprep.subr.mxu0 0.0
    %1236 = vmatpush1.msra.mxu0 %v1184
    %1237 = vmatprep.subr.mxu0 0.0
    %1238 = vmatpush1.msra.mxu0 %v1185
    %1239 = vmatprep.subr.mxu0 0.0
    %1240 = vmatpush1.msra.mxu0 %v1186
    %1241 = vmatprep.subr.mxu0 0.0
    %1242 = vmatpush1.msra.mxu0 %v1187
    %1243 = vmatprep.subr.mxu0 0.0
    %1244 = vmatpush1.msra.mxu0 %v1188
    %1245 = vmatprep.subr.mxu0 0.0
    %1246 = vmatpush1.msra.mxu0 %v1189
    %1247 = vmatprep.subr.mxu0 0.0
    %1248 = vmatpush1.msra.mxu0 %v1190
    %1249 = vmatprep.subr.mxu0 0.0
    %1250 = vmatpush1.msra.mxu0 %v1191
    %1251 = vmatprep.subr.mxu0 0.0
    %1252 = vmatpush1.msra.mxu0 %v1192
    %1253 = vmatprep.subr.mxu0 0.0
    %1254 = vmatpush1.msra.mxu0 %v1193
    %1255 = vmatprep.subr.mxu0 0.0
    %1256 = vmatpush1.msra.mxu0 %v1194
    %1257 = vmatprep.subr.mxu0 0.0
    %1258 = vmatpush1.msra.mxu0 %v1195
    %1259 = vmatprep.subr.mxu0 0.0
    %1260 = vmatpush1.msra.mxu0 %v1196
    %1261 = vmatprep.subr.mxu0 0.0
    %1262 = vmatpush1.msra.mxu0 %v1197
    %1263 = vmatprep.subr.mxu0 0.0
    %1264 = vmatpush1.msra.mxu0 %v1198
    %1265 = vmatprep.subr.mxu0 0.0
    %1266 = vmatpush1.msra.mxu0 %v1199
    %1267 = vmatprep.subr.mxu0 0.0
    %1268 = vmatpush1.msra.mxu0 %v1200
    %1269 = vmatprep.subr.mxu0 0.0
    %1270 = vmatpush1.msra.mxu0 %v1201
    %1271 = vmatprep.subr.mxu0 0.0
    %1272 = vmatpush1.msra.mxu0 %v1202
    %1273 = vmatprep.subr.mxu0 0.0
    %1274 = vmatpush1.msra.mxu0 %v1203
    %1275 = vmatprep.mubr.f32.mxu0 %v1171
    %1276 = vmatmul.mubr.f32.gmra.mrb[0].mxu0 %v1170
    %v1277 = vpop.f32.mrb[0].mxu0
    %v1278 = vadd.f32 %v1209, %v1277
    %v1279 = vpop.f32.mrb[0].mxu0
    %1280 = vdwg.mxu0
    %s1281 = sld [smem:[#allocation3]]
    %v1282 = vlaneseq
    %v1283 = vand.u32 %v1282, 127
    %vm1284 = vcmp.lt.s32.totalorder %v1283, 8
    %vm1285 = vcmp.ge.s32.totalorder %v1283, 8
    %vm1286 = vcmp.lt.s32.totalorder %v1283, 12
    %vm1287 = vmand %vm1285, %vm1286
    %vm1288 = vcmp.eq.s32.totalorder %v1283, 12
    %vm1289 = vcmp.eq.s32.totalorder %v1283, 13
    %v1290 = vsel %vm1284, %v1278, -1e+30
    %1291 = vmax.xlane.f32.xlu0 %v1290
    %v1292 = vpop.xlane.xlu0 %1291
    %v1293 = vsub.f32 %v1290, %v1292
    %v1294 = vmul.f32 %v1293, 1.442695
    %v1295 = vpow.pop %v1294
    %v1296 = vsel %vm1284, %v1295, 0.0
    %1297 = vadd.xlane.f32.xlu0 %v1296
    %v1298 = vpop.xlane.xlu0 %1297
    %v1299 = vrcp.pop %v1298
    %v1300 = vmul.f32 %v1296, %v1299
    %v1301 = vsel %vm1287, %v1278, -1e+30
    %1302 = vmax.xlane.f32.xlu0 %v1301
    %v1303 = vpop.xlane.xlu0 %1302
    %v1304 = vsub.f32 %v1301, %v1303
    %v1305 = vmul.f32 %v1304, 1.442695
    %v1306 = vpow.pop %v1305
    %v1307 = vsel %vm1287, %v1306, 0.0
    %1308 = vadd.xlane.f32.xlu0 %v1307
    %v1309 = vpop.xlane.xlu0 %1308
    %v1310 = vrcp.pop %v1309
    %v1311 = vmul.f32 %v1307, %v1310
    %v1312 = vxor.u32 %v1278, 2147483648
    %v1313 = vmul.f32 %v1312, 1.442695
    %v1314 = vpow.pop %v1313
    %v1315 = vadd.f32 %v1314, 1.0
    %v1316 = vrcp.pop %v1315
    %v1317 = vmul.f32 1.0, %v1316
    %s1318 = ssub.f32 %s1281, 1e-10
    %v1319 = vstv %s1318
    %v1320 = vmul.f32 %v1317, %v1319
    %v1321 = vadd.f32 %v1320, 1e-10
    %v1322 = vmax.f32 %v1278, 0.0
    %vm1323 = vcmp.ne.f32.partialorder %v1278, %v1278
    %v1324 = vadd.f32 %v1278, 0.0
    %v1325 = vand.u32 2147483647, %v1278
    %v1326 = vsub.f32 0.0, %v1325
    %v1327 = vmul.f32 %v1326, 1.442695
    %v1328 = vpow.pop %v1327
    %v1329 = vadd.f32 %v1328, 1.0
    %v1330 = vlog2.pop %v1329
    %v1331 = vmul.f32 %v1330, 0.6931472
    %v1332 = vmul.f32 -0.5, %v1328
    %v1333 = vadd.f32 %v1332, 1.0
    %v1334 = vmul.f32 %v1333, %v1328
    %v1335 = vand.u32 2147483647, %v1328
    %vm1336 = vcmp.lt.f32.partialorder %v1335, 0.0004427343
    %v1337 = vsel %vm1336, %v1334, %v1331
    %v1338 = vadd.f32 %v1322, %v1337
    %v1339 = vsel %vm1323, %v1324, %v1338
    %v1340 = vsel %vm1289, %v1339, 0.0
    %v1341 = vsel %vm1288, %v1321, %v1340
    %v1342 = vsel %vm1287, %v1311, %v1341
    %v1343 = vsel %vm1284, %v1300, %v1342
    %1344 = vst [vmem:[#allocation12] sm:$0xff] %v1343
    // Predicated region
    $region62: #{tpu_custom_call.1} parent=1 // pred_check
      _
    $region63: #{tpu_custom_call.1} parent=1 // pred_check_branch
      %1346 = sbr.rel (0) target = $region65
    $region64: #{tpu_custom_call.1} parent=1 // pred_region
      %s1348 = ssub.s32 128, 128
      %1349 = vsyncadd [#allocation6], %s1348
      %s1351 = sshll.u32 [#allocation12], 4
      %s1352 = int_to_ptr.vmem [resolvable:$true] %s1351
      %1354 = dma.vmem_to_hbm [thread:$0]  %s1352, 128, %s11, [#allocation6]
    $region65: #{tpu_custom_call.1} parent=1 // pred_fallthru
      _
    // Predicated region
    $region66: #{tpu_custom_call.1} parent=1 // pred_check
      _
    $region67: #{tpu_custom_call.1} parent=1 // pred_check_branch
      %1356 = sbr.rel (0) target = $region69
    $region68: #{tpu_custom_call.1} parent=1 // pred_region
      %s1358 = ssub.s32 128, 128
      %1359 = vsyncadd [#allocation14], %s1358
      %s1361 = sshll.u32 [#allocation13], 4
      %s1362 = int_to_ptr.vmem [resolvable:$true] %s1361
      %1364 = dma.vmem_to_hbm [thread:$0]  %s1362, 128, %s12, [#allocation14]
    $region69: #{tpu_custom_call.1} parent=1 // pred_fallthru
      _
    // Predicated region
    $region70: #{tpu_custom_call.1} parent=1 // pred_check
      _
    $region71: #{tpu_custom_call.1} parent=1 // pred_check_branch
      %1366 = sbr.rel (0) target = $region73
    $region72: #{tpu_custom_call.1} parent=1 // pred_region
      %s1368 = ssub.s32 128, 128
      %1369 = vsyncadd [#allocation14], %s1368
      %s1371 = sshll.u32 [#allocation15], 4
      %s1372 = int_to_ptr.vmem [resolvable:$true] %s1371
      %1374 = dma.vmem_to_hbm [thread:$0]  %s1372, 128, %s13, [#allocation14]
    $region73: #{tpu_custom_call.1} parent=1 // pred_fallthru
      _
    // Predicated region
    $region74: #{tpu_custom_call.1} parent=1 // pred_check
      _
    $region75: #{tpu_custom_call.1} parent=1 // pred_check_branch
      %1376 = sbr.rel (0) target = $region77
    $region76: #{tpu_custom_call.1} parent=1 // pred_region
      %1377 = dma.done [#allocation6], 128
    $region77: #{tpu_custom_call.1} parent=1 // pred_fallthru
      _
    // Predicated region
    $region78: #{tpu_custom_call.1} parent=1 // pred_check
      _
    $region79: #{tpu_custom_call.1} parent=1 // pred_check_branch
      %1379 = sbr.rel (0) target = $region81
    $region80: #{tpu_custom_call.1} parent=1 // pred_region
      %1380 = dma.done [#allocation14], 128
    $region81: #{tpu_custom_call.1} parent=1 // pred_fallthru
      _
    // Predicated region
    $region82: #{tpu_custom_call.1} parent=1 // pred_check
      _
    $region83: #{tpu_custom_call.1} parent=1 // pred_check_branch
      %1382 = sbr.rel (0) target = $region85
    $region84: #{tpu_custom_call.1} parent=1 // pred_region
      %1383 = dma.done [#allocation14], 128
    $region85: #{tpu_custom_call.1} parent=1 // pred_fallthru
      _
    %1384 = vsyncpa [#allocation5], 1
    %1385 = vsyncpa [#allocation8], 1
    %1386 = vsyncpa [#allocation11], 1
    %1387 = vsyncpa [#allocation6], 1
    %1388 = vsyncpa [#allocation14], 1

</llo_original>
